<compile_context>
chip_gen: v6e
topology: v6e:2x2x1
jax: 0.10.0
libtpu: 0.0.40
codegen_flags: <defaults>
</compile_context>

<pallas_src>
import functools

import jax
import jax.numpy as jnp
from jax.experimental import pallas as pl
from jax.experimental.pallas import tpu as pltpu

LN_EPS = 1e-5


def _ln_two_chunks(yh, g, b, cs):
    """LayerNorm over each cs-wide half of the last dim of yh (f32, width 2*cs).

    Per-chunk stats are combined with a lane-index select (pure VALU work),
    avoiding a full-width concatenate copy; yh is normalized in one pass.
    """
    y_lo = yh[..., :cs]
    y_hi = yh[..., cs:]
    mu_lo = jnp.mean(y_lo, axis=-1, keepdims=True)
    mu_hi = jnp.mean(y_hi, axis=-1, keepdims=True)
    d_lo = y_lo - mu_lo
    d_hi = y_hi - mu_hi
    r_lo = jax.lax.rsqrt(jnp.mean(d_lo * d_lo, axis=-1, keepdims=True) + LN_EPS)
    r_hi = jax.lax.rsqrt(jnp.mean(d_hi * d_hi, axis=-1, keepdims=True) + LN_EPS)
    lane = jax.lax.broadcasted_iota(jnp.int32, yh.shape, yh.ndim - 1)
    is_hi = lane >= cs
    mu = jnp.where(is_hi, mu_hi, mu_lo)
    rstd = jnp.where(is_hi, r_hi, r_lo)
    return (yh - mu) * rstd * g + b


def _patch_expand_kernel(x_ref, w_ref, g_ref, b_ref, o_ref, *, cs, compute_dtype):
    # x_ref: (TR, W, C)    input tokens for TR image-rows (full W, full C)
    # w_ref: (C, 2C)       full expand weight (W^T), compute dtype (bf16)
    # g_ref/b_ref: (1, C)  LayerNorm gamma/beta tiled over the two p2 chunks (f32)
    # o_ref: (TR, 2, W, C) row tile of the (B*H, 2, W, C) output
    c = x_ref.shape[-1]

    # One MXU matmul with N = 2C, f32 accumulation; 3-D contraction, no reshape.
    x = x_ref[...].astype(compute_dtype)
    y = jax.lax.dot_general(
        x, w_ref[...],
        dimension_numbers=(((2,), (0,)), ((), ())),
        preferred_element_type=jnp.float32,
    )  # (TR, W, 2C) = [p1=0,p2=0 | p1=0,p2=1 | p1=1,p2=0 | p1=1,p2=1]

    g = g_ref[...]
    b = b_ref[...]
    # Two lane-dense stores, one per p1 half; the rearrange is fused into the
    # output layout so no transpose is needed anywhere.
    o_ref[:, 0, :, :] = _ln_two_chunks(y[..., :c], g, b, cs).astype(o_ref.dtype)
    o_ref[:, 1, :, :] = _ln_two_chunks(y[..., c:], g, b, cs).astype(o_ref.dtype)


def _vmem_capacity_bytes(default=128 * 1024 * 1024):
    try:
        info = pltpu.get_tpu_info()
        cap = getattr(info, "vmem_capacity_bytes", None)
        if cap:
            return int(cap)
    except Exception:
        pass
    return default


def patch_expand(x, w_t, gamma, beta, H, W, *,
                 compute_dtype=jnp.bfloat16, out_dtype=None,
                 target_tokens=2048):
    """x: (B, H*W, C); w_t: (C, 2C) (= Linear weight transposed);
    gamma/beta: (C//2,). Returns (B, 4*H*W, C//2)."""
    B, L, C = x.shape
    assert L == H * W, "input feature has wrong size"
    assert C % 2 == 0
    cs = C // 2
    out_dtype = x.dtype if out_dtype is None else out_dtype
    BH = B * H

    # View tokens as (B*H, W, C): free reshape, keeps full W/C per block so the
    # (8, 128) block-shape rule is satisfied for any W, C.
    x3 = x.reshape(BH, W, C)
    w2 = w_t.astype(compute_dtype)                               # (C, 2C)
    # gamma/beta tiled once over the two p2 chunks (hoisted broadcast), f32.
    g_full = jnp.tile(gamma.astype(jnp.float32), 2).reshape(1, C)
    b_full = jnp.tile(beta.astype(jnp.float32), 2).reshape(1, C)

    # ---- generation-aware VMEM sizing ---------------------------------------
    # v5e/v6e: 128 MiB physical -> 64 MiB limit; v7x: 64 MiB physical -> ~45 MiB.
    phys = _vmem_capacity_bytes()
    vmem_limit = min(64 * 1024 * 1024, max(16 * 1024 * 1024, int(phys * 0.7)))
    vmem_budget = int(vmem_limit * 0.8)

    in_b = jnp.dtype(x.dtype).itemsize
    out_b = jnp.dtype(out_dtype).itemsize
    w_b = jnp.dtype(compute_dtype).itemsize
    # Fixed (tile-independent) blocks, counted double-buffered to be safe.
    fixed = 2 * (C * 2 * C * w_b) + 2 * (2 * C * 4)
    # Per image-row: input (W, C) + output (2, W, C), double-buffered.
    per_row = W * C * (in_b + 2 * out_b)

    tr = max(1, min(BH, max(1, target_tokens // W)))
    while tr > 1 and fixed + 2 * tr * per_row > vmem_budget:
        tr = (tr + 1) // 2
    n_tiles = pl.cdiv(BH, tr)

    kernel = functools.partial(_patch_expand_kernel, cs=cs,
                               compute_dtype=compute_dtype)

    y = pl.pallas_call(
        kernel,
        out_shape=jax.ShapeDtypeStruct((BH, 2, W, C), out_dtype),
        grid=(n_tiles,),
        in_specs=[
            pl.BlockSpec((tr, W, C), lambda i: (i, 0, 0)),   # x rows
            pl.BlockSpec((C, 2 * C), lambda i: (0, 0)),      # full weight
            pl.BlockSpec((1, C), lambda i: (0, 0)),          # gamma (tiled)
            pl.BlockSpec((1, C), lambda i: (0, 0)),          # beta  (tiled)
        ],
        out_specs=pl.BlockSpec((tr, 2, W, C), lambda i: (i, 0, 0, 0)),
        compiler_params=pltpu.CompilerParams(
            dimension_semantics=("parallel",),
            vmem_limit_bytes=vmem_limit,
        ),
    )(x3, w2, g_full, b_full)

    # (B*H, 2, W, 2, cs) contiguous order == (B, 2H, 2W, cs): the rearrange was
    # fused into the kernel's output layout, so this is a pure reshape.
    return y.reshape(B, 4 * H * W, cs)


def patch_expand_ref(x, w_t, gamma, beta, H, W, *, compute_dtype=None):
    """Pure-JAX reference mirroring the PyTorch forward."""
    B, L, C = x.shape
    if compute_dtype is not None:
        y = jnp.dot(x.astype(compute_dtype), w_t.astype(compute_dtype),
                    preferred_element_type=jnp.float32)
    else:
        y = jnp.dot(x, w_t, preferred_element_type=jnp.float32)
    C2 = y.shape[-1]
    cs = C2 // 4
    y = y.reshape(B, H, W, 2, 2, cs).transpose(0, 1, 3, 2, 4, 5)
    y = y.reshape(B, 4 * H * W, cs)
    mu = y.mean(-1, keepdims=True)
    var = ((y - mu) ** 2).mean(-1, keepdims=True)
    return (y - mu) * jax.lax.rsqrt(var + LN_EPS) * gamma + beta


if __name__ == "__main__":
    key = jax.random.PRNGKey(0)
    k_x, k_w = jax.random.split(key)

    B, H, W, dim = 2, 8, 8, 32
    L = H * W

    x = jax.random.normal(k_x, (B, L, dim), dtype=jnp.float32)
    # nn.Linear(dim, 2*dim, bias=False): weight (2*dim, dim); kernel uses W^T.
    w = jax.random.normal(k_w, (2 * dim, dim), dtype=jnp.float32) * 0.05
    w_t = w.T                                   # (dim, 2*dim)
    gamma = jnp.ones((dim // 2,), dtype=jnp.float32)   # LayerNorm default init
    beta = jnp.zeros((dim // 2,), dtype=jnp.float32)

    out = jax.block_until_ready(patch_expand(x, w_t, gamma, beta, H, W))
    assert out.shape == (B, 4 * L, dim // 2)

    # Tight check against a reference with the same bf16-matmul / f32-LN math.
    ref_bf16 = patch_expand_ref(x, w_t, gamma, beta, H, W,
                                compute_dtype=jnp.bfloat16)
    assert jnp.allclose(out, ref_bf16, atol=2e-3, rtol=2e-3)

    # Looser sanity check against full-f32 math (PyTorch-equivalent numerics).
    ref_f32 = patch_expand_ref(x, w_t, gamma, beta, H, W)
    assert jnp.allclose(out, ref_f32, atol=5e-2, rtol=5e-2)

    print("KERNEL_OK")
</pallas_src>

<mosaic_0001>
module attributes {stable_mosaic.version = 11 : i64} {
  func.func @_patch_expand_kernel(%arg0: i32, %arg1: memref<16x8x32xf32, #tpu.memory_space<vmem>>, %arg2: memref<32x64xbf16, #tpu.memory_space<vmem>>, %arg3: memref<1x32xf32, #tpu.memory_space<vmem>>, %arg4: memref<1x32xf32, #tpu.memory_space<vmem>>, %arg5: memref<16x2x8x32xf32, #tpu.memory_space<vmem>>) attributes {dimension_semantics = [#tpu.dimension_semantics<parallel>], iteration_bounds = array<i64: 1>, scalar_prefetch = 0 : i64, scratch_operands = 0 : i64, tpu.core_type = #tpu.core_type<tc>, window_params = [{transform_indices = @transform_0, window_bounds = array<i64: 16, 8, 32>}, {pipeline_mode = #tpu.pipeline_mode<synchronous>, transform_indices = @transform_1, window_bounds = array<i64: 32, 64>}, {pipeline_mode = #tpu.pipeline_mode<synchronous>, transform_indices = @transform_2, window_bounds = array<i64: 1, 32>}, {pipeline_mode = #tpu.pipeline_mode<synchronous>, transform_indices = @transform_3, window_bounds = array<i64: 1, 32>}, {transform_indices = @transform_4, window_bounds = array<i64: 16, 2, 8, 32>}]} {
    %c0 = arith.constant 0 : index
    %c0_0 = arith.constant 0 : index
    %c0_1 = arith.constant 0 : index
    %0 = vector.load %arg1[%c0, %c0_0, %c0_1] : memref<16x8x32xf32, #tpu.memory_space<vmem>>, vector<16x8x32xf32>
    %1 = arith.truncf %0 : vector<16x8x32xf32> to vector<16x8x32xbf16>
    %c0_2 = arith.constant 0 : index
    %c0_3 = arith.constant 0 : index
    %2 = vector.load %arg2[%c0_2, %c0_3] : memref<32x64xbf16, #tpu.memory_space<vmem>>, vector<32x64xbf16>
    %cst = arith.constant dense<0.000000e+00> : vector<16x8x64xf32>
    %3 = tpu.matmul %1, %2, %cst {dimension_numbers = #tpu.dot_dimension_numbers<[2], [0], [0, 1], [1], [0, 0, 0, 1, 1, 1], [], []>} : vector<16x8x32xbf16>, vector<32x64xbf16>, vector<16x8x64xf32> -> vector<16x8x64xf32>
    %c0_4 = arith.constant 0 : index
    %c0_5 = arith.constant 0 : index
    %4 = vector.load %arg3[%c0_4, %c0_5] : memref<1x32xf32, #tpu.memory_space<vmem>>, vector<1x32xf32>
    %c0_6 = arith.constant 0 : index
    %c0_7 = arith.constant 0 : index
    %5 = vector.load %arg4[%c0_6, %c0_7] : memref<1x32xf32, #tpu.memory_space<vmem>>, vector<1x32xf32>
    %6 = vector.extract_strided_slice %3 {offsets = [0, 0, 0], sizes = [16, 8, 32], strides = [1, 1, 1]} : vector<16x8x64xf32> to vector<16x8x32xf32>
    %7 = vector.extract_strided_slice %6 {offsets = [0, 0, 0], sizes = [16, 8, 16], strides = [1, 1, 1]} : vector<16x8x32xf32> to vector<16x8x16xf32>
    %8 = vector.extract_strided_slice %6 {offsets = [0, 0, 16], sizes = [16, 8, 16], strides = [1, 1, 1]} : vector<16x8x32xf32> to vector<16x8x16xf32>
    %cst_8 = arith.constant dense<0.000000e+00> : vector<16x8xf32>
    %9 = vector.multi_reduction <add>, %7, %cst_8 [2] : vector<16x8x16xf32> to vector<16x8xf32>
    %10 = vector.shape_cast %9 : vector<16x8xf32> to vector<16x8x1xf32>
    %cst_9 = arith.constant 1.600000e+01 : f32
    %11 = vector.broadcast %cst_9 : f32 to vector<16x8x1xf32>
    %12 = arith.divf %10, %11 : vector<16x8x1xf32>
    %cst_10 = arith.constant dense<0.000000e+00> : vector<16x8xf32>
    %13 = vector.multi_reduction <add>, %8, %cst_10 [2] : vector<16x8x16xf32> to vector<16x8xf32>
    %14 = vector.shape_cast %13 : vector<16x8xf32> to vector<16x8x1xf32>
    %cst_11 = arith.constant 1.600000e+01 : f32
    %15 = vector.broadcast %cst_11 : f32 to vector<16x8x1xf32>
    %16 = arith.divf %14, %15 : vector<16x8x1xf32>
    %17 = vector.broadcast %12 : vector<16x8x1xf32> to vector<16x8x16xf32>
    %18 = arith.subf %7, %17 : vector<16x8x16xf32>
    %19 = vector.broadcast %16 : vector<16x8x1xf32> to vector<16x8x16xf32>
    %20 = arith.subf %8, %19 : vector<16x8x16xf32>
    %21 = arith.mulf %18, %18 : vector<16x8x16xf32>
    %cst_12 = arith.constant dense<0.000000e+00> : vector<16x8xf32>
    %22 = vector.multi_reduction <add>, %21, %cst_12 [2] : vector<16x8x16xf32> to vector<16x8xf32>
    %23 = vector.shape_cast %22 : vector<16x8xf32> to vector<16x8x1xf32>
    %cst_13 = arith.constant 1.600000e+01 : f32
    %24 = vector.broadcast %cst_13 : f32 to vector<16x8x1xf32>
    %25 = arith.divf %23, %24 : vector<16x8x1xf32>
    %cst_14 = arith.constant 9.99999974E-6 : f32
    %26 = vector.broadcast %cst_14 : f32 to vector<16x8x1xf32>
    %27 = arith.addf %25, %26 : vector<16x8x1xf32>
    %28 = math.rsqrt %27 : vector<16x8x1xf32>
    %29 = arith.mulf %20, %20 : vector<16x8x16xf32>
    %cst_15 = arith.constant dense<0.000000e+00> : vector<16x8xf32>
    %30 = vector.multi_reduction <add>, %29, %cst_15 [2] : vector<16x8x16xf32> to vector<16x8xf32>
    %31 = vector.shape_cast %30 : vector<16x8xf32> to vector<16x8x1xf32>
    %cst_16 = arith.constant 1.600000e+01 : f32
    %32 = vector.broadcast %cst_16 : f32 to vector<16x8x1xf32>
    %33 = arith.divf %31, %32 : vector<16x8x1xf32>
    %cst_17 = arith.constant 9.99999974E-6 : f32
    %34 = vector.broadcast %cst_17 : f32 to vector<16x8x1xf32>
    %35 = arith.addf %33, %34 : vector<16x8x1xf32>
    %36 = math.rsqrt %35 : vector<16x8x1xf32>
    %37 = tpu.iota {dimensions = array<i32: 2>} : vector<16x8x32xi32>
    %c16_i32 = arith.constant 16 : i32
    %38 = vector.broadcast %c16_i32 : i32 to vector<16x8x32xi32>
    %39 = arith.cmpi sge, %37, %38 : vector<16x8x32xi32>
    %40 = vector.shape_cast %16 : vector<16x8x1xf32> to vector<16x8x1xf32>
    %41 = vector.broadcast %40 : vector<16x8x1xf32> to vector<16x8x32xf32>
    %42 = vector.shape_cast %12 : vector<16x8x1xf32> to vector<16x8x1xf32>
    %43 = vector.broadcast %42 : vector<16x8x1xf32> to vector<16x8x32xf32>
    %44 = arith.select %39, %41, %43 : vector<16x8x32xi1>, vector<16x8x32xf32>
    %45 = vector.shape_cast %36 : vector<16x8x1xf32> to vector<16x8x1xf32>
    %46 = vector.broadcast %45 : vector<16x8x1xf32> to vector<16x8x32xf32>
    %47 = vector.shape_cast %28 : vector<16x8x1xf32> to vector<16x8x1xf32>
    %48 = vector.broadcast %47 : vector<16x8x1xf32> to vector<16x8x32xf32>
    %49 = arith.select %39, %46, %48 : vector<16x8x32xi1>, vector<16x8x32xf32>
    %50 = arith.subf %6, %44 : vector<16x8x32xf32>
    %51 = arith.mulf %50, %49 : vector<16x8x32xf32>
    %52 = vector.shape_cast %4 : vector<1x32xf32> to vector<1x1x32xf32>
    %53 = vector.broadcast %52 : vector<1x1x32xf32> to vector<16x8x32xf32>
    %54 = arith.mulf %51, %53 : vector<16x8x32xf32>
    %55 = vector.shape_cast %5 : vector<1x32xf32> to vector<1x1x32xf32>
    %56 = vector.broadcast %55 : vector<1x1x32xf32> to vector<16x8x32xf32>
    %57 = arith.addf %54, %56 : vector<16x8x32xf32>
    %c0_18 = arith.constant 0 : index
    %c0_19 = arith.constant 0 : index
    %c0_20 = arith.constant 0 : index
    %c0_21 = arith.constant 0 : index
    %58 = vector.load %arg5[%c0_18, %c0_19, %c0_20, %c0_21] : memref<16x2x8x32xf32, #tpu.memory_space<vmem>>, vector<16x1x8x32xf32>
    %59 = vector.shape_cast %58 : vector<16x1x8x32xf32> to vector<16x8x32xf32>
    %60 = vector.shape_cast %57 : vector<16x8x32xf32> to vector<16x1x8x32xf32>
    tpu.vector_store %arg5[%c0_18, %c0_19, %c0_20, %c0_21], %60 {strides = array<i32>} : memref<16x2x8x32xf32, #tpu.memory_space<vmem>>, vector<16x1x8x32xf32>,
    %61 = vector.extract_strided_slice %3 {offsets = [0, 0, 32], sizes = [16, 8, 32], strides = [1, 1, 1]} : vector<16x8x64xf32> to vector<16x8x32xf32>
    %62 = vector.extract_strided_slice %61 {offsets = [0, 0, 0], sizes = [16, 8, 16], strides = [1, 1, 1]} : vector<16x8x32xf32> to vector<16x8x16xf32>
    %63 = vector.extract_strided_slice %61 {offsets = [0, 0, 16], sizes = [16, 8, 16], strides = [1, 1, 1]} : vector<16x8x32xf32> to vector<16x8x16xf32>
    %cst_22 = arith.constant dense<0.000000e+00> : vector<16x8xf32>
    %64 = vector.multi_reduction <add>, %62, %cst_22 [2] : vector<16x8x16xf32> to vector<16x8xf32>
    %65 = vector.shape_cast %64 : vector<16x8xf32> to vector<16x8x1xf32>
    %cst_23 = arith.constant 1.600000e+01 : f32
    %66 = vector.broadcast %cst_23 : f32 to vector<16x8x1xf32>
    %67 = arith.divf %65, %66 : vector<16x8x1xf32>
    %cst_24 = arith.constant dense<0.000000e+00> : vector<16x8xf32>
    %68 = vector.multi_reduction <add>, %63, %cst_24 [2] : vector<16x8x16xf32> to vector<16x8xf32>
    %69 = vector.shape_cast %68 : vector<16x8xf32> to vector<16x8x1xf32>
    %cst_25 = arith.constant 1.600000e+01 : f32
    %70 = vector.broadcast %cst_25 : f32 to vector<16x8x1xf32>
    %71 = arith.divf %69, %70 : vector<16x8x1xf32>
    %72 = vector.broadcast %67 : vector<16x8x1xf32> to vector<16x8x16xf32>
    %73 = arith.subf %62, %72 : vector<16x8x16xf32>
    %74 = vector.broadcast %71 : vector<16x8x1xf32> to vector<16x8x16xf32>
    %75 = arith.subf %63, %74 : vector<16x8x16xf32>
    %76 = arith.mulf %73, %73 : vector<16x8x16xf32>
    %cst_26 = arith.constant dense<0.000000e+00> : vector<16x8xf32>
    %77 = vector.multi_reduction <add>, %76, %cst_26 [2] : vector<16x8x16xf32> to vector<16x8xf32>
    %78 = vector.shape_cast %77 : vector<16x8xf32> to vector<16x8x1xf32>
    %cst_27 = arith.constant 1.600000e+01 : f32
    %79 = vector.broadcast %cst_27 : f32 to vector<16x8x1xf32>
    %80 = arith.divf %78, %79 : vector<16x8x1xf32>
    %cst_28 = arith.constant 9.99999974E-6 : f32
    %81 = vector.broadcast %cst_28 : f32 to vector<16x8x1xf32>
    %82 = arith.addf %80, %81 : vector<16x8x1xf32>
    %83 = math.rsqrt %82 : vector<16x8x1xf32>
    %84 = arith.mulf %75, %75 : vector<16x8x16xf32>
    %cst_29 = arith.constant dense<0.000000e+00> : vector<16x8xf32>
    %85 = vector.multi_reduction <add>, %84, %cst_29 [2] : vector<16x8x16xf32> to vector<16x8xf32>
    %86 = vector.shape_cast %85 : vector<16x8xf32> to vector<16x8x1xf32>
    %cst_30 = arith.constant 1.600000e+01 : f32
    %87 = vector.broadcast %cst_30 : f32 to vector<16x8x1xf32>
    %88 = arith.divf %86, %87 : vector<16x8x1xf32>
    %cst_31 = arith.constant 9.99999974E-6 : f32
    %89 = vector.broadcast %cst_31 : f32 to vector<16x8x1xf32>
    %90 = arith.addf %88, %89 : vector<16x8x1xf32>
    %91 = math.rsqrt %90 : vector<16x8x1xf32>
    %92 = tpu.iota {dimensions = array<i32: 2>} : vector<16x8x32xi32>
    %c16_i32_32 = arith.constant 16 : i32
    %93 = vector.broadcast %c16_i32_32 : i32 to vector<16x8x32xi32>
    %94 = arith.cmpi sge, %92, %93 : vector<16x8x32xi32>
    %95 = vector.shape_cast %71 : vector<16x8x1xf32> to vector<16x8x1xf32>
    %96 = vector.broadcast %95 : vector<16x8x1xf32> to vector<16x8x32xf32>
    %97 = vector.shape_cast %67 : vector<16x8x1xf32> to vector<16x8x1xf32>
    %98 = vector.broadcast %97 : vector<16x8x1xf32> to vector<16x8x32xf32>
    %99 = arith.select %94, %96, %98 : vector<16x8x32xi1>, vector<16x8x32xf32>
    %100 = vector.shape_cast %91 : vector<16x8x1xf32> to vector<16x8x1xf32>
    %101 = vector.broadcast %100 : vector<16x8x1xf32> to vector<16x8x32xf32>
    %102 = vector.shape_cast %83 : vector<16x8x1xf32> to vector<16x8x1xf32>
    %103 = vector.broadcast %102 : vector<16x8x1xf32> to vector<16x8x32xf32>
    %104 = arith.select %94, %101, %103 : vector<16x8x32xi1>, vector<16x8x32xf32>
    %105 = arith.subf %61, %99 : vector<16x8x32xf32>
    %106 = arith.mulf %105, %104 : vector<16x8x32xf32>
    %107 = vector.shape_cast %4 : vector<1x32xf32> to vector<1x1x32xf32>
    %108 = vector.broadcast %107 : vector<1x1x32xf32> to vector<16x8x32xf32>
    %109 = arith.mulf %106, %108 : vector<16x8x32xf32>
    %110 = vector.shape_cast %5 : vector<1x32xf32> to vector<1x1x32xf32>
    %111 = vector.broadcast %110 : vector<1x1x32xf32> to vector<16x8x32xf32>
    %112 = arith.addf %109, %111 : vector<16x8x32xf32>
    %c0_33 = arith.constant 0 : index
    %c1 = arith.constant 1 : index
    %c0_34 = arith.constant 0 : index
    %c0_35 = arith.constant 0 : index
    %113 = vector.load %arg5[%c0_33, %c1, %c0_34, %c0_35] : memref<16x2x8x32xf32, #tpu.memory_space<vmem>>, vector<16x1x8x32xf32>
    %114 = vector.shape_cast %113 : vector<16x1x8x32xf32> to vector<16x8x32xf32>
    %115 = vector.shape_cast %112 : vector<16x8x32xf32> to vector<16x1x8x32xf32>
    tpu.vector_store %arg5[%c0_33, %c1, %c0_34, %c0_35], %115 {strides = array<i32>} : memref<16x2x8x32xf32, #tpu.memory_space<vmem>>, vector<16x1x8x32xf32>,
    return
  }
  func.func @transform_0(%arg0: i32) -> (i32, i32, i32) {
    %c0_i32 = arith.constant 0 : i32
    %c0_i32_0 = arith.constant 0 : i32
    %c0_i32_1 = arith.constant 0 : i32
    return %arg0, %c0_i32, %c0_i32_0 : i32, i32, i32
  }
  func.func @transform_1(%arg0: i32) -> (i32, i32) {
    %c0_i32 = arith.constant 0 : i32
    %c0_i32_0 = arith.constant 0 : i32
    %c0_i32_1 = arith.constant 0 : i32
    return %c0_i32, %c0_i32_0 : i32, i32
  }
  func.func @transform_2(%arg0: i32) -> (i32, i32) {
    %c0_i32 = arith.constant 0 : i32
    %c0_i32_0 = arith.constant 0 : i32
    %c0_i32_1 = arith.constant 0 : i32
    return %c0_i32, %c0_i32_0 : i32, i32
  }
  func.func @transform_3(%arg0: i32) -> (i32, i32) {
    %c0_i32 = arith.constant 0 : i32
    %c0_i32_0 = arith.constant 0 : i32
    %c0_i32_1 = arith.constant 0 : i32
    return %c0_i32, %c0_i32_0 : i32, i32
  }
  func.func @transform_4(%arg0: i32) -> (i32, i32, i32, i32) {
    %c0_i32 = arith.constant 0 : i32
    %c0_i32_0 = arith.constant 0 : i32
    %c0_i32_1 = arith.constant 0 : i32
    %c0_i32_2 = arith.constant 0 : i32
    return %arg0, %c0_i32, %c0_i32_0, %c0_i32_1 : i32, i32, i32, i32
  }
}

</mosaic_0001>

<llo_original>
// kernel: tpu_custom_call.1
$region0: #{tpu_custom_call.1}
  #allocation0 [shape = 'u32[]', space=smem, size = 0x4, offset = 0x4, fixed_abs, tag = 'smem constant byte address 0x4 - core index']
  #allocation1 [shape = 'u32[144,128]{1,0:T(1,128)}', space=vmem, size = 0x12000, scoped, tag = 'internal scratch']
  %s0 = inlined_call_operand.hbm [shape: f32[16,8,32], index: 0, kind: input, shape index: {}]
  %s1 = inlined_call_operand.hbm [shape: bf16[32,64], index: 1, kind: input, shape index: {}]
  %s2 = inlined_call_operand.vmem [shape: f32[1,32], index: 2, kind: input, shape index: {}]
  %s3 = inlined_call_operand.vmem [shape: f32[1,32], index: 3, kind: input, shape index: {}]
  %s4 = inlined_call_operand.hbm [shape: f32[16,2,8,32], index: 4, kind: output, shape index: {}]
  %s5 = sld [smem:[#allocation0]]
  $region34: #{tpu_custom_call.1} parent=0
    _
  %s7 = ssub.s32 1, %s5
  %s8 = scalar_select 0, %s7, %s5
  $region1: #{tpu_custom_call.1} parent=0
    #allocation2 [shape = 'u8[65536]{0}', space=vmem, size = 0x10000, scoped, tag = 'input window, operand 0, single buffered']
    #allocation3 [shape = 's32[1]{0}', space=sflag, size = 0x4, scoped, tag = 'scoped memory for tpu_custom_call.1']
    #allocation4 [shape = 's32[1]{0}', space=sflag, size = 0x4, scoped, tag = 'scoped memory for tpu_custom_call.1']
    #allocation5 [shape = 'u8[8192]{0}', space=vmem, size = 0x2000, scoped, tag = 'input window, operand 1, single buffered']
    #allocation6 [shape = 's32[1]{0}', space=sflag, size = 0x4, scoped, tag = 'scoped memory for tpu_custom_call.1']
    #allocation7 [shape = 'u8[131072]{0}', space=vmem, size = 0x20000, scoped, tag = 'output window, operand 0, single buffered']
    %9 = vsyncpa [#allocation3], 0
    %10 = vsyncpa [#allocation6], 0
    %11 = vsyncpa [#allocation4], 0
    // Predicated region
    $region2: #{tpu_custom_call.1} parent=1 // pred_check
      _
    $region3: #{tpu_custom_call.1} parent=1 // pred_check_branch
      %13 = sbr.rel (0) target = $region5
    $region4: #{tpu_custom_call.1} parent=1 // pred_region
      %s15 = ssub.s32 2048, 2048
      %16 = vsyncadd [#allocation3], %s15
      %s17 = sshll.u32 [#allocation2], 4
      %s18 = int_to_ptr.vmem [resolvable:$true] %s17
      %23 = dma.hbm_to_vmem [thread:$0]  %s0, 2048, %s18, [#allocation3], 128, 128, 8
    $region5: #{tpu_custom_call.1} parent=1 // pred_fallthru
      _
    // Predicated region
    $region6: #{tpu_custom_call.1} parent=1 // pred_check
      _
    $region7: #{tpu_custom_call.1} parent=1 // pred_check_branch
      %25 = sbr.rel (0) target = $region9
    $region8: #{tpu_custom_call.1} parent=1 // pred_region
      %s27 = ssub.s32 256, 256
      %28 = vsyncadd [#allocation6], %s27
      %s29 = sshll.u32 [#allocation5], 4
      %s30 = int_to_ptr.vmem [resolvable:$true] %s29
      %35 = dma.hbm_to_vmem [thread:$0]  %s1, 256, %s30, [#allocation6], 64, 64, 4
    $region9: #{tpu_custom_call.1} parent=1 // pred_fallthru
      _
    // Predicated region
    $region10: #{tpu_custom_call.1} parent=1 // pred_check
      _
    $region11: #{tpu_custom_call.1} parent=1 // pred_check_branch
      %37 = sbr.rel (0) target = $region13
    $region12: #{tpu_custom_call.1} parent=1 // pred_region
      _
    $region13: #{tpu_custom_call.1} parent=1 // pred_fallthru
      _
    // Predicated region
    $region14: #{tpu_custom_call.1} parent=1 // pred_check
      _
    $region15: #{tpu_custom_call.1} parent=1 // pred_check_branch
      %39 = sbr.rel (0) target = $region17
    $region16: #{tpu_custom_call.1} parent=1 // pred_region
      _
    $region17: #{tpu_custom_call.1} parent=1 // pred_fallthru
      _
    // Predicated region
    $region18: #{tpu_custom_call.1} parent=1 // pred_check
      _
    $region19: #{tpu_custom_call.1} parent=1 // pred_check_branch
      %41 = sbr.rel (0) target = $region21
    $region20: #{tpu_custom_call.1} parent=1 // pred_region
      %42 = dma.done [#allocation3], 2048
    $region21: #{tpu_custom_call.1} parent=1 // pred_fallthru
      _
    // Predicated region
    $region22: #{tpu_custom_call.1} parent=1 // pred_check
      _
    $region23: #{tpu_custom_call.1} parent=1 // pred_check_branch
      %44 = sbr.rel (0) target = $region25
    $region24: #{tpu_custom_call.1} parent=1 // pred_region
      %45 = dma.done [#allocation6], 256
    $region25: #{tpu_custom_call.1} parent=1 // pred_fallthru
      _
    %v47 = vld [vmem:[#allocation2] sm:$0xff]
    %v48 = vld [vmem:[#allocation2 + $0x8] sm:$0xff]
    %v49 = vld [vmem:[#allocation2 + $0x10] sm:$0xff]
    %v50 = vld [vmem:[#allocation2 + $0x18] sm:$0xff]
    %v51 = vld [vmem:[#allocation2 + $0x20] sm:$0xff]
    %v52 = vld [vmem:[#allocation2 + $0x28] sm:$0xff]
    %v53 = vld [vmem:[#allocation2 + $0x30] sm:$0xff]
    %v54 = vld [vmem:[#allocation2 + $0x38] sm:$0xff]
    %v55 = vld [vmem:[#allocation2 + $0x40] sm:$0xff]
    %v56 = vld [vmem:[#allocation2 + $0x48] sm:$0xff]
    %v57 = vld [vmem:[#allocation2 + $0x50] sm:$0xff]
    %v58 = vld [vmem:[#allocation2 + $0x58] sm:$0xff]
    %v59 = vld [vmem:[#allocation2 + $0x60] sm:$0xff]
    %v60 = vld [vmem:[#allocation2 + $0x68] sm:$0xff]
    %v61 = vld [vmem:[#allocation2 + $0x70] sm:$0xff]
    %v62 = vld [vmem:[#allocation2 + $0x78] sm:$0xff]
    %v63 = vpack.c.bf16 %v47, %v47
    %v64 = vpack.c.bf16 %v48, %v48
    %v65 = vpack.c.bf16 %v49, %v49
    %v66 = vpack.c.bf16 %v50, %v50
    %v67 = vpack.c.bf16 %v51, %v51
    %v68 = vpack.c.bf16 %v52, %v52
    %v69 = vpack.c.bf16 %v53, %v53
    %v70 = vpack.c.bf16 %v54, %v54
    %v71 = vpack.c.bf16 %v55, %v55
    %v72 = vpack.c.bf16 %v56, %v56
    %v73 = vpack.c.bf16 %v57, %v57
    %v74 = vpack.c.bf16 %v58, %v58
    %v75 = vpack.c.bf16 %v59, %v59
    %v76 = vpack.c.bf16 %v60, %v60
    %v77 = vpack.c.bf16 %v61, %v61
    %v78 = vpack.c.bf16 %v62, %v62
    %v79 = vld [vmem:[#allocation5] sm:$0xf]
    %v80 = vld [vmem:[#allocation5 + $0x4] sm:$0xf]
    %v81 = vld [vmem:[#allocation5 + $0x8] sm:$0xf]
    %v82 = vld [vmem:[#allocation5 + $0xc] sm:$0xf]
    %v99 = vunpack.c.l.b16 %v63
    %v100 = vunpack.c.l.b16 %v64
    %v101 = vunpack.c.l.b16 %v65
    %v102 = vunpack.c.l.b16 %v66
    %v103 = vunpack.c.l.b16 %v67
    %v104 = vunpack.c.l.b16 %v68
    %v105 = vunpack.c.l.b16 %v69
    %v106 = vunpack.c.l.b16 %v70
    %v107 = vunpack.c.l.b16 %v71
    %v108 = vunpack.c.l.b16 %v72
    %v109 = vunpack.c.l.b16 %v73
    %v110 = vunpack.c.l.b16 %v74
    %v111 = vunpack.c.l.b16 %v75
    %v112 = vunpack.c.l.b16 %v76
    %v113 = vunpack.c.l.b16 %v77
    %v114 = vunpack.c.l.b16 %v78
    %v115 = vpack.c.b16 %v100, %v99
    %v116 = vpack.c.b16 %v102, %v101
    %v117 = vpack.c.b16 %v104, %v103
    %v118 = vpack.c.b16 %v106, %v105
    %v119 = vpack.c.b16 %v108, %v107
    %v120 = vpack.c.b16 %v110, %v109
    %v121 = vpack.c.b16 %v112, %v111
    %v122 = vpack.c.b16 %v114, %v113
    %v127 = vunpack.c.l.b16 %v79
    %v128 = vunpack.c.l.b16 %v80
    %v129 = vunpack.c.l.b16 %v81
    %v130 = vunpack.c.l.b16 %v82
    %v131 = vpack.c.b16 %v128, %v127
    %v132 = vpack.c.b16 %v130, %v129
    %vm135 = vcmask 261120
    %v137 = vsel %vm135, %v115, 0
    %v140 = vsel %vm135, %v116, 0
    %v143 = vsel %vm135, %v117, 0
    %v146 = vsel %vm135, %v118, 0
    %v149 = vsel %vm135, %v119, 0
    %v152 = vsel %vm135, %v120, 0
    %v155 = vsel %vm135, %v121, 0
    %v158 = vsel %vm135, %v122, 0
    %160 = vmatprep.subr.bf16.mxu0 0
    %161 = vmatpush1.bf16.msra.mxu0 0
    %162 = vmatprep.subr.bf16.mxu0 0
    %163 = vmatpush1.bf16.msra.mxu0 0
    %164 = vmatprep.subr.bf16.mxu0 0
    %165 = vmatpush1.bf16.msra.mxu0 0
    %166 = vmatprep.subr.bf16.mxu0 0
    %167 = vmatpush1.bf16.msra.mxu0 0
    %168 = vmatprep.subr.bf16.mxu0 0
    %169 = vmatpush1.bf16.msra.mxu0 0
    %170 = vmatprep.subr.bf16.mxu0 0
    %171 = vmatpush1.bf16.msra.mxu0 0
    %172 = vmatprep.subr.bf16.mxu0 0
    %173 = vmatpush1.bf16.msra.mxu0 %v132
    %174 = vmatprep.subr.bf16.mxu0 0
    %175 = vmatpush1.bf16.msra.mxu0 %v131
    %176 = vmatprep.subr.bf16.mxu0 0
    %177 = vmatpush2.bf16.msra.mxu0 0
    %178 = vmatprep.subr.bf16.mxu0 0
    %179 = vmatpush2.bf16.msra.mxu0 0
    %180 = vmatprep.subr.bf16.mxu0 0
    %181 = vmatpush2.bf16.msra.mxu0 0
    %182 = vmatprep.subr.bf16.mxu0 0
    %183 = vmatpush2.bf16.msra.mxu0 0
    %184 = vmatprep.subr.bf16.mxu0 0
    %185 = vmatpush2.bf16.msra.mxu0 0
    %186 = vmatprep.subr.bf16.mxu0 0
    %187 = vmatpush2.bf16.msra.mxu0 0
    %188 = vmatprep.subr.bf16.mxu0 0
    %189 = vmatpush2.bf16.msra.mxu0 0
    %190 = vmatprep.subr.bf16.mxu0 0
    %191 = vmatpush2.bf16.msra.mxu0 0
    %192 = vmatprep.mubr.bf16.mxu0 0
    %193 = vmatmul.mubr.bf16.gmra.mxu0 %v137
    %v194 = vpop.f32.mrf.mxu0
    %v195 = vadd.f32 0.0, %v194
    %v196 = vpop.f32.mrf.mxu0
    %v197 = vpop.f32.mrf.mxu0
    %v198 = vadd.f32 0.0, %v197
    %v199 = vpop.f32.mrf.mxu0
    %200 = vmatprep.mubr.bf16.mxu0 0
    %201 = vmatmul.mubr.bf16.gmra.mxu0 %v140
    %v202 = vpop.f32.mrf.mxu0
    %v203 = vadd.f32 0.0, %v202
    %v204 = vpop.f32.mrf.mxu0
    %v205 = vpop.f32.mrf.mxu0
    %v206 = vadd.f32 0.0, %v205
    %v207 = vpop.f32.mrf.mxu0
    %208 = vmatprep.mubr.bf16.mxu0 0
    %209 = vmatmul.mubr.bf16.gmra.mxu0 %v143
    %v210 = vpop.f32.mrf.mxu0
    %v211 = vadd.f32 0.0, %v210
    %v212 = vpop.f32.mrf.mxu0
    %v213 = vpop.f32.mrf.mxu0
    %v214 = vadd.f32 0.0, %v213
    %v215 = vpop.f32.mrf.mxu0
    %216 = vmatprep.mubr.bf16.mxu0 0
    %217 = vmatmul.mubr.bf16.gmra.mxu0 %v146
    %v218 = vpop.f32.mrf.mxu0
    %v219 = vadd.f32 0.0, %v218
    %v220 = vpop.f32.mrf.mxu0
    %v221 = vpop.f32.mrf.mxu0
    %v222 = vadd.f32 0.0, %v221
    %v223 = vpop.f32.mrf.mxu0
    %224 = vmatprep.mubr.bf16.mxu0 0
    %225 = vmatmul.mubr.bf16.gmra.mxu0 %v149
    %v226 = vpop.f32.mrf.mxu0
    %v227 = vadd.f32 0.0, %v226
    %v228 = vpop.f32.mrf.mxu0
    %v229 = vpop.f32.mrf.mxu0
    %v230 = vadd.f32 0.0, %v229
    %v231 = vpop.f32.mrf.mxu0
    %232 = vmatprep.mubr.bf16.mxu0 0
    %233 = vmatmul.mubr.bf16.gmra.mxu0 %v152
    %v234 = vpop.f32.mrf.mxu0
    %v235 = vadd.f32 0.0, %v234
    %v236 = vpop.f32.mrf.mxu0
    %v237 = vpop.f32.mrf.mxu0
    %v238 = vadd.f32 0.0, %v237
    %v239 = vpop.f32.mrf.mxu0
    %240 = vmatprep.mubr.bf16.mxu0 0
    %241 = vmatmul.mubr.bf16.gmra.mxu0 %v155
    %v242 = vpop.f32.mrf.mxu0
    %v243 = vadd.f32 0.0, %v242
    %v244 = vpop.f32.mrf.mxu0
    %v245 = vpop.f32.mrf.mxu0
    %v246 = vadd.f32 0.0, %v245
    %v247 = vpop.f32.mrf.mxu0
    %248 = vmatprep.mubr.bf16.mxu0 0
    %249 = vmatmul.mubr.bf16.gmra.mxu0 %v158
    %v250 = vpop.f32.mrf.mxu0
    %v251 = vadd.f32 0.0, %v250
    %v252 = vpop.f32.mrf.mxu0
    %v253 = vpop.f32.mrf.mxu0
    %v254 = vadd.f32 0.0, %v253
    %v255 = vpop.f32.mrf.mxu0
    %256 = vdwg.mxu0
    %v257 = vld [vmem:[%s2] sm:$0x1]
    %v258 = vld [vmem:[%s3] sm:$0x1]
    %vm259 = vcmask 130048
    %v260 = vsel %vm259, %v195, 0.0
    %261 = vadd.xlane.f32.xlu0 %v260
    %v262 = vpop.xlane.xlu0 %261
    %v263 = vsel %vm259, %v198, 0.0
    %264 = vadd.xlane.f32.xlu0 %v263
    %v265 = vpop.xlane.xlu0 %264
    %v266 = vsel %vm259, %v203, 0.0
    %267 = vadd.xlane.f32.xlu0 %v266
    %v268 = vpop.xlane.xlu0 %267
    %v269 = vsel %vm259, %v206, 0.0
    %270 = vadd.xlane.f32.xlu0 %v269
    %v271 = vpop.xlane.xlu0 %270
    %v272 = vsel %vm259, %v211, 0.0
    %273 = vadd.xlane.f32.xlu0 %v272
    %v274 = vpop.xlane.xlu0 %273
    %v275 = vsel %vm259, %v214, 0.0
    %276 = vadd.xlane.f32.xlu0 %v275
    %v277 = vpop.xlane.xlu0 %276
    %v278 = vsel %vm259, %v219, 0.0
    %279 = vadd.xlane.f32.xlu0 %v278
    %v280 = vpop.xlane.xlu0 %279
    %v281 = vsel %vm259, %v222, 0.0
    %282 = vadd.xlane.f32.xlu0 %v281
    %v283 = vpop.xlane.xlu0 %282
    %v284 = vsel %vm259, %v227, 0.0
    %285 = vadd.xlane.f32.xlu0 %v284
    %v286 = vpop.xlane.xlu0 %285
    %v287 = vsel %vm259, %v230, 0.0
    %288 = vadd.xlane.f32.xlu0 %v287
    %v289 = vpop.xlane.xlu0 %288
    %v290 = vsel %vm259, %v235, 0.0
    %291 = vadd.xlane.f32.xlu0 %v290
    %v292 = vpop.xlane.xlu0 %291
    %v293 = vsel %vm259, %v238, 0.0
    %294 = vadd.xlane.f32.xlu0 %v293
    %v295 = vpop.xlane.xlu0 %294
    %v296 = vsel %vm259, %v243, 0.0
    %297 = vadd.xlane.f32.xlu0 %v296
    %v298 = vpop.xlane.xlu0 %297
    %v299 = vsel %vm259, %v246, 0.0
    %300 = vadd.xlane.f32.xlu0 %v299
    %v301 = vpop.xlane.xlu0 %300
    %v302 = vsel %vm259, %v251, 0.0
    %303 = vadd.xlane.f32.xlu0 %v302
    %v304 = vpop.xlane.xlu0 %303
    %v305 = vsel %vm259, %v254, 0.0
    %306 = vadd.xlane.f32.xlu0 %v305
    %v307 = vpop.xlane.xlu0 %306
    %v308 = vrcp.pop 16.0
    %v309 = vmul.f32 %v262, %v308
    %v310 = vmul.f32 %v265, %v308
    %v311 = vmul.f32 %v268, %v308
    %v312 = vmul.f32 %v271, %v308
    %v313 = vmul.f32 %v274, %v308
    %v314 = vmul.f32 %v277, %v308
    %v315 = vmul.f32 %v280, %v308
    %v316 = vmul.f32 %v283, %v308
    %v317 = vmul.f32 %v286, %v308
    %v318 = vmul.f32 %v289, %v308
    %v319 = vmul.f32 %v292, %v308
    %v320 = vmul.f32 %v295, %v308
    %v321 = vmul.f32 %v298, %v308
    %v322 = vmul.f32 %v301, %v308
    %v323 = vmul.f32 %v304, %v308
    %v324 = vmul.f32 %v307, %v308
    %341 = vrot.lane.b32.xlu0 %v195, 112
    %v342 = vpop.permute.xlu0 %341
    %343 = vrot.lane.b32.xlu0 %v198, 112
    %v344 = vpop.permute.xlu0 %343
    %345 = vrot.lane.b32.xlu0 %v203, 112
    %v346 = vpop.permute.xlu0 %345
    %347 = vrot.lane.b32.xlu0 %v206, 112
    %v348 = vpop.permute.xlu0 %347
    %349 = vrot.lane.b32.xlu0 %v211, 112
    %v350 = vpop.permute.xlu0 %349
    %351 = vrot.lane.b32.xlu0 %v214, 112
    %v352 = vpop.permute.xlu0 %351
    %353 = vrot.lane.b32.xlu0 %v219, 112
    %v354 = vpop.permute.xlu0 %353
    %355 = vrot.lane.b32.xlu0 %v222, 112
    %v356 = vpop.permute.xlu0 %355
    %357 = vrot.lane.b32.xlu0 %v227, 112
    %v358 = vpop.permute.xlu0 %357
    %359 = vrot.lane.b32.xlu0 %v230, 112
    %v360 = vpop.permute.xlu0 %359
    %361 = vrot.lane.b32.xlu0 %v235, 112
    %v362 = vpop.permute.xlu0 %361
    %363 = vrot.lane.b32.xlu0 %v238, 112
    %v364 = vpop.permute.xlu0 %363
    %365 = vrot.lane.b32.xlu0 %v243, 112
    %v366 = vpop.permute.xlu0 %365
    %367 = vrot.lane.b32.xlu0 %v246, 112
    %v368 = vpop.permute.xlu0 %367
    %369 = vrot.lane.b32.xlu0 %v251, 112
    %v370 = vpop.permute.xlu0 %369
    %371 = vrot.lane.b32.xlu0 %v254, 112
    %v372 = vpop.permute.xlu0 %371
    %v389 = vsel %vm259, %v342, 0.0
    %390 = vadd.xlane.f32.xlu0 %v389
    %v391 = vpop.xlane.xlu0 %390
    %v392 = vsel %vm259, %v344, 0.0
    %393 = vadd.xlane.f32.xlu0 %v392
    %v394 = vpop.xlane.xlu0 %393
    %v395 = vsel %vm259, %v346, 0.0
    %396 = vadd.xlane.f32.xlu0 %v395
    %v397 = vpop.xlane.xlu0 %396
    %v398 = vsel %vm259, %v348, 0.0
    %399 = vadd.xlane.f32.xlu0 %v398
    %v400 = vpop.xlane.xlu0 %399
    %v401 = vsel %vm259, %v350, 0.0
    %402 = vadd.xlane.f32.xlu0 %v401
    %v403 = vpop.xlane.xlu0 %402
    %v404 = vsel %vm259, %v352, 0.0
    %405 = vadd.xlane.f32.xlu0 %v404
    %v406 = vpop.xlane.xlu0 %405
    %v407 = vsel %vm259, %v354, 0.0
    %408 = vadd.xlane.f32.xlu0 %v407
    %v409 = vpop.xlane.xlu0 %408
    %v410 = vsel %vm259, %v356, 0.0
    %411 = vadd.xlane.f32.xlu0 %v410
    %v412 = vpop.xlane.xlu0 %411
    %v413 = vsel %vm259, %v358, 0.0
    %414 = vadd.xlane.f32.xlu0 %v413
    %v415 = vpop.xlane.xlu0 %414
    %v416 = vsel %vm259, %v360, 0.0
    %417 = vadd.xlane.f32.xlu0 %v416
    %v418 = vpop.xlane.xlu0 %417
    %v419 = vsel %vm259, %v362, 0.0
    %420 = vadd.xlane.f32.xlu0 %v419
    %v421 = vpop.xlane.xlu0 %420
    %v422 = vsel %vm259, %v364, 0.0
    %423 = vadd.xlane.f32.xlu0 %v422
    %v424 = vpop.xlane.xlu0 %423
    %v425 = vsel %vm259, %v366, 0.0
    %426 = vadd.xlane.f32.xlu0 %v425
    %v427 = vpop.xlane.xlu0 %426
    %v428 = vsel %vm259, %v368, 0.0
    %429 = vadd.xlane.f32.xlu0 %v428
    %v430 = vpop.xlane.xlu0 %429
    %v431 = vsel %vm259, %v370, 0.0
    %432 = vadd.xlane.f32.xlu0 %v431
    %v433 = vpop.xlane.xlu0 %432
    %v434 = vsel %vm259, %v372, 0.0
    %435 = vadd.xlane.f32.xlu0 %v434
    %v436 = vpop.xlane.xlu0 %435
    %v437 = vmul.f32 %v391, %v308
    %v438 = vmul.f32 %v394, %v308
    %v439 = vmul.f32 %v397, %v308
    %v440 = vmul.f32 %v400, %v308
    %v441 = vmul.f32 %v403, %v308
    %v442 = vmul.f32 %v406, %v308
    %v443 = vmul.f32 %v409, %v308
    %v444 = vmul.f32 %v412, %v308
    %v445 = vmul.f32 %v415, %v308
    %v446 = vmul.f32 %v418, %v308
    %v447 = vmul.f32 %v421, %v308
    %v448 = vmul.f32 %v424, %v308
    %v449 = vmul.f32 %v427, %v308
    %v450 = vmul.f32 %v430, %v308
    %v451 = vmul.f32 %v433, %v308
    %v452 = vmul.f32 %v436, %v308
    %v453 = vsub.f32 %v195, %v309
    %v454 = vsub.f32 %v198, %v310
    %v455 = vsub.f32 %v203, %v311
    %v456 = vsub.f32 %v206, %v312
    %v457 = vsub.f32 %v211, %v313
    %v458 = vsub.f32 %v214, %v314
    %v459 = vsub.f32 %v219, %v315
    %v460 = vsub.f32 %v222, %v316
    %v461 = vsub.f32 %v227, %v317
    %v462 = vsub.f32 %v230, %v318
    %v463 = vsub.f32 %v235, %v319
    %v464 = vsub.f32 %v238, %v320
    %v465 = vsub.f32 %v243, %v321
    %v466 = vsub.f32 %v246, %v322
    %v467 = vsub.f32 %v251, %v323
    %v468 = vsub.f32 %v254, %v324
    %v469 = vsub.f32 %v195, %v437
    %v470 = vsub.f32 %v198, %v438
    %v471 = vsub.f32 %v203, %v439
    %v472 = vsub.f32 %v206, %v440
    %v473 = vsub.f32 %v211, %v441
    %v474 = vsub.f32 %v214, %v442
    %v475 = vsub.f32 %v219, %v443
    %v476 = vsub.f32 %v222, %v444
    %v477 = vsub.f32 %v227, %v445
    %v478 = vsub.f32 %v230, %v446
    %v479 = vsub.f32 %v235, %v447
    %v480 = vsub.f32 %v238, %v448
    %v481 = vsub.f32 %v243, %v449
    %v482 = vsub.f32 %v246, %v450
    %v483 = vsub.f32 %v251, %v451
    %v484 = vsub.f32 %v254, %v452
    %v485 = vmul.f32 %v453, %v453
    %v486 = vmul.f32 %v454, %v454
    %v487 = vmul.f32 %v455, %v455
    %v488 = vmul.f32 %v456, %v456
    %v489 = vmul.f32 %v457, %v457
    %v490 = vmul.f32 %v458, %v458
    %v491 = vmul.f32 %v459, %v459
    %v492 = vmul.f32 %v460, %v460
    %v493 = vmul.f32 %v461, %v461
    %v494 = vmul.f32 %v462, %v462
    %v495 = vmul.f32 %v463, %v463
    %v496 = vmul.f32 %v464, %v464
    %v497 = vmul.f32 %v465, %v465
    %v498 = vmul.f32 %v466, %v466
    %v499 = vmul.f32 %v467, %v467
    %v500 = vmul.f32 %v468, %v468
    %v501 = vsel %vm259, %v485, 0.0
    %502 = vadd.xlane.f32.xlu0 %v501
    %v503 = vpop.xlane.xlu0 %502
    %v504 = vsel %vm259, %v486, 0.0
    %505 = vadd.xlane.f32.xlu0 %v504
    %v506 = vpop.xlane.xlu0 %505
    %v507 = vsel %vm259, %v487, 0.0
    %508 = vadd.xlane.f32.xlu0 %v507
    %v509 = vpop.xlane.xlu0 %508
    %v510 = vsel %vm259, %v488, 0.0
    %511 = vadd.xlane.f32.xlu0 %v510
    %v512 = vpop.xlane.xlu0 %511
    %v513 = vsel %vm259, %v489, 0.0
    %514 = vadd.xlane.f32.xlu0 %v513
    %v515 = vpop.xlane.xlu0 %514
    %v516 = vsel %vm259, %v490, 0.0
    %517 = vadd.xlane.f32.xlu0 %v516
    %v518 = vpop.xlane.xlu0 %517
    %v519 = vsel %vm259, %v491, 0.0
    %520 = vadd.xlane.f32.xlu0 %v519
    %v521 = vpop.xlane.xlu0 %520
    %v522 = vsel %vm259, %v492, 0.0
    %523 = vadd.xlane.f32.xlu0 %v522
    %v524 = vpop.xlane.xlu0 %523
    %v525 = vsel %vm259, %v493, 0.0
    %526 = vadd.xlane.f32.xlu0 %v525
    %v527 = vpop.xlane.xlu0 %526
    %v528 = vsel %vm259, %v494, 0.0
    %529 = vadd.xlane.f32.xlu0 %v528
    %v530 = vpop.xlane.xlu0 %529
    %v531 = vsel %vm259, %v495, 0.0
    %532 = vadd.xlane.f32.xlu0 %v531
    %v533 = vpop.xlane.xlu0 %532
    %v534 = vsel %vm259, %v496, 0.0
    %535 = vadd.xlane.f32.xlu0 %v534
    %v536 = vpop.xlane.xlu0 %535
    %v537 = vsel %vm259, %v497, 0.0
    %538 = vadd.xlane.f32.xlu0 %v537
    %v539 = vpop.xlane.xlu0 %538
    %v540 = vsel %vm259, %v498, 0.0
    %541 = vadd.xlane.f32.xlu0 %v540
    %v542 = vpop.xlane.xlu0 %541
    %v543 = vsel %vm259, %v499, 0.0
    %544 = vadd.xlane.f32.xlu0 %v543
    %v545 = vpop.xlane.xlu0 %544
    %v546 = vsel %vm259, %v500, 0.0
    %547 = vadd.xlane.f32.xlu0 %v546
    %v548 = vpop.xlane.xlu0 %547
    %v549 = vmul.f32 %v503, %v308
    %v550 = vmul.f32 %v506, %v308
    %v551 = vmul.f32 %v509, %v308
    %v552 = vmul.f32 %v512, %v308
    %v553 = vmul.f32 %v515, %v308
    %v554 = vmul.f32 %v518, %v308
    %v555 = vmul.f32 %v521, %v308
    %v556 = vmul.f32 %v524, %v308
    %v557 = vmul.f32 %v527, %v308
    %v558 = vmul.f32 %v530, %v308
    %v559 = vmul.f32 %v533, %v308
    %v560 = vmul.f32 %v536, %v308
    %v561 = vmul.f32 %v539, %v308
    %v562 = vmul.f32 %v542, %v308
    %v563 = vmul.f32 %v545, %v308
    %v564 = vmul.f32 %v548, %v308
    %v565 = vadd.f32 %v549, 1e-05
    %v566 = vadd.f32 %v550, 1e-05
    %v567 = vadd.f32 %v551, 1e-05
    %v568 = vadd.f32 %v552, 1e-05
    %v569 = vadd.f32 %v553, 1e-05
    %v570 = vadd.f32 %v554, 1e-05
    %v571 = vadd.f32 %v555, 1e-05
    %v572 = vadd.f32 %v556, 1e-05
    %v573 = vadd.f32 %v557, 1e-05
    %v574 = vadd.f32 %v558, 1e-05
    %v575 = vadd.f32 %v559, 1e-05
    %v576 = vadd.f32 %v560, 1e-05
    %v577 = vadd.f32 %v561, 1e-05
    %v578 = vadd.f32 %v562, 1e-05
    %v579 = vadd.f32 %v563, 1e-05
    %v580 = vadd.f32 %v564, 1e-05
    %v581 = vrsqrt.pop %v565
    %v582 = vrsqrt.pop %v566
    %v583 = vrsqrt.pop %v567
    %v584 = vrsqrt.pop %v568
    %v585 = vrsqrt.pop %v569
    %v586 = vrsqrt.pop %v570
    %v587 = vrsqrt.pop %v571
    %v588 = vrsqrt.pop %v572
    %v589 = vrsqrt.pop %v573
    %v590 = vrsqrt.pop %v574
    %v591 = vrsqrt.pop %v575
    %v592 = vrsqrt.pop %v576
    %v593 = vrsqrt.pop %v577
    %v594 = vrsqrt.pop %v578
    %v595 = vrsqrt.pop %v579
    %v596 = vrsqrt.pop %v580
    %v597 = vmul.f32 %v469, %v469
    %v598 = vmul.f32 %v470, %v470
    %v599 = vmul.f32 %v471, %v471
    %v600 = vmul.f32 %v472, %v472
    %v601 = vmul.f32 %v473, %v473
    %v602 = vmul.f32 %v474, %v474
    %v603 = vmul.f32 %v475, %v475
    %v604 = vmul.f32 %v476, %v476
    %v605 = vmul.f32 %v477, %v477
    %v606 = vmul.f32 %v478, %v478
    %v607 = vmul.f32 %v479, %v479
    %v608 = vmul.f32 %v480, %v480
    %v609 = vmul.f32 %v481, %v481
    %v610 = vmul.f32 %v482, %v482
    %v611 = vmul.f32 %v483, %v483
    %v612 = vmul.f32 %v484, %v484
    %629 = vrot.lane.b32.xlu0 %v597, 112
    %v630 = vpop.permute.xlu0 %629
    %631 = vrot.lane.b32.xlu0 %v598, 112
    %v632 = vpop.permute.xlu0 %631
    %633 = vrot.lane.b32.xlu0 %v599, 112
    %v634 = vpop.permute.xlu0 %633
    %635 = vrot.lane.b32.xlu0 %v600, 112
    %v636 = vpop.permute.xlu0 %635
    %637 = vrot.lane.b32.xlu0 %v601, 112
    %v638 = vpop.permute.xlu0 %637
    %639 = vrot.lane.b32.xlu0 %v602, 112
    %v640 = vpop.permute.xlu0 %639
    %641 = vrot.lane.b32.xlu0 %v603, 112
    %v642 = vpop.permute.xlu0 %641
    %643 = vrot.lane.b32.xlu0 %v604, 112
    %v644 = vpop.permute.xlu0 %643
    %645 = vrot.lane.b32.xlu0 %v605, 112
    %v646 = vpop.permute.xlu0 %645
    %647 = vrot.lane.b32.xlu0 %v606, 112
    %v648 = vpop.permute.xlu0 %647
    %649 = vrot.lane.b32.xlu0 %v607, 112
    %v650 = vpop.permute.xlu0 %649
    %651 = vrot.lane.b32.xlu0 %v608, 112
    %v652 = vpop.permute.xlu0 %651
    %653 = vrot.lane.b32.xlu0 %v609, 112
    %v654 = vpop.permute.xlu0 %653
    %655 = vrot.lane.b32.xlu0 %v610, 112
    %v656 = vpop.permute.xlu0 %655
    %657 = vrot.lane.b32.xlu0 %v611, 112
    %v658 = vpop.permute.xlu0 %657
    %659 = vrot.lane.b32.xlu0 %v612, 112
    %v660 = vpop.permute.xlu0 %659
    %v677 = vsel %vm259, %v630, 0.0
    %678 = vadd.xlane.f32.xlu0 %v677
    %v679 = vpop.xlane.xlu0 %678
    %v680 = vsel %vm259, %v632, 0.0
    %681 = vadd.xlane.f32.xlu0 %v680
    %v682 = vpop.xlane.xlu0 %681
    %v683 = vsel %vm259, %v634, 0.0
    %684 = vadd.xlane.f32.xlu0 %v683
    %v685 = vpop.xlane.xlu0 %684
    %v686 = vsel %vm259, %v636, 0.0
    %687 = vadd.xlane.f32.xlu0 %v686
    %v688 = vpop.xlane.xlu0 %687
    %v689 = vsel %vm259, %v638, 0.0
    %690 = vadd.xlane.f32.xlu0 %v689
    %v691 = vpop.xlane.xlu0 %690
    %v692 = vsel %vm259, %v640, 0.0
    %693 = vadd.xlane.f32.xlu0 %v692
    %v694 = vpop.xlane.xlu0 %693
    %v695 = vsel %vm259, %v642, 0.0
    %696 = vadd.xlane.f32.xlu0 %v695
    %v697 = vpop.xlane.xlu0 %696
    %v698 = vsel %vm259, %v644, 0.0
    %699 = vadd.xlane.f32.xlu0 %v698
    %v700 = vpop.xlane.xlu0 %699
    %v701 = vsel %vm259, %v646, 0.0
    %702 = vadd.xlane.f32.xlu0 %v701
    %v703 = vpop.xlane.xlu0 %702
    %v704 = vsel %vm259, %v648, 0.0
    %705 = vadd.xlane.f32.xlu0 %v704
    %v706 = vpop.xlane.xlu0 %705
    %v707 = vsel %vm259, %v650, 0.0
    %708 = vadd.xlane.f32.xlu0 %v707
    %v709 = vpop.xlane.xlu0 %708
    %v710 = vsel %vm259, %v652, 0.0
    %711 = vadd.xlane.f32.xlu0 %v710
    %v712 = vpop.xlane.xlu0 %711
    %v713 = vsel %vm259, %v654, 0.0
    %714 = vadd.xlane.f32.xlu0 %v713
    %v715 = vpop.xlane.xlu0 %714
    %v716 = vsel %vm259, %v656, 0.0
    %717 = vadd.xlane.f32.xlu0 %v716
    %v718 = vpop.xlane.xlu0 %717
    %v719 = vsel %vm259, %v658, 0.0
    %720 = vadd.xlane.f32.xlu0 %v719
    %v721 = vpop.xlane.xlu0 %720
    %v722 = vsel %vm259, %v660, 0.0
    %723 = vadd.xlane.f32.xlu0 %v722
    %v724 = vpop.xlane.xlu0 %723
    %v725 = vmul.f32 %v679, %v308
    %v726 = vmul.f32 %v682, %v308
    %v727 = vmul.f32 %v685, %v308
    %v728 = vmul.f32 %v688, %v308
    %v729 = vmul.f32 %v691, %v308
    %v730 = vmul.f32 %v694, %v308
    %v731 = vmul.f32 %v697, %v308
    %v732 = vmul.f32 %v700, %v308
    %v733 = vmul.f32 %v703, %v308
    %v734 = vmul.f32 %v706, %v308
    %v735 = vmul.f32 %v709, %v308
    %v736 = vmul.f32 %v712, %v308
    %v737 = vmul.f32 %v715, %v308
    %v738 = vmul.f32 %v718, %v308
    %v739 = vmul.f32 %v721, %v308
    %v740 = vmul.f32 %v724, %v308
    %v741 = vadd.f32 %v725, 1e-05
    %v742 = vadd.f32 %v726, 1e-05
    %v743 = vadd.f32 %v727, 1e-05
    %v744 = vadd.f32 %v728, 1e-05
    %v745 = vadd.f32 %v729, 1e-05
    %v746 = vadd.f32 %v730, 1e-05
    %v747 = vadd.f32 %v731, 1e-05
    %v748 = vadd.f32 %v732, 1e-05
    %v749 = vadd.f32 %v733, 1e-05
    %v750 = vadd.f32 %v734, 1e-05
    %v751 = vadd.f32 %v735, 1e-05
    %v752 = vadd.f32 %v736, 1e-05
    %v753 = vadd.f32 %v737, 1e-05
    %v754 = vadd.f32 %v738, 1e-05
    %v755 = vadd.f32 %v739, 1e-05
    %v756 = vadd.f32 %v740, 1e-05
    %v757 = vrsqrt.pop %v741
    %v758 = vrsqrt.pop %v742
    %v759 = vrsqrt.pop %v743
    %v760 = vrsqrt.pop %v744
    %v761 = vrsqrt.pop %v745
    %v762 = vrsqrt.pop %v746
    %v763 = vrsqrt.pop %v747
    %v764 = vrsqrt.pop %v748
    %v765 = vrsqrt.pop %v749
    %v766 = vrsqrt.pop %v750
    %v767 = vrsqrt.pop %v751
    %v768 = vrsqrt.pop %v752
    %v769 = vrsqrt.pop %v753
    %v770 = vrsqrt.pop %v754
    %v771 = vrsqrt.pop %v755
    %v772 = vrsqrt.pop %v756
    %v773 = vlaneseq
    %v774 = vand.u32 %v773, 127
    %vm775 = vcmp.ge.s32.totalorder %v774, 16
    %v776 = vsel %vm775, %v437, %v309
    %v777 = vsel %vm775, %v438, %v310
    %v778 = vsel %vm775, %v439, %v311
    %v779 = vsel %vm775, %v440, %v312
    %v780 = vsel %vm775, %v441, %v313
    %v781 = vsel %vm775, %v442, %v314
    %v782 = vsel %vm775, %v443, %v315
    %v783 = vsel %vm775, %v444, %v316
    %v784 = vsel %vm775, %v445, %v317
    %v785 = vsel %vm775, %v446, %v318
    %v786 = vsel %vm775, %v447, %v319
    %v787 = vsel %vm775, %v448, %v320
    %v788 = vsel %vm775, %v449, %v321
    %v789 = vsel %vm775, %v450, %v322
    %v790 = vsel %vm775, %v451, %v323
    %v791 = vsel %vm775, %v452, %v324
    %v792 = vsel %vm775, %v757, %v581
    %v793 = vsel %vm775, %v758, %v582
    %v794 = vsel %vm775, %v759, %v583
    %v795 = vsel %vm775, %v760, %v584
    %v796 = vsel %vm775, %v761, %v585
    %v797 = vsel %vm775, %v762, %v586
    %v798 = vsel %vm775, %v763, %v587
    %v799 = vsel %vm775, %v764, %v588
    %v800 = vsel %vm775, %v765, %v589
    %v801 = vsel %vm775, %v766, %v590
    %v802 = vsel %vm775, %v767, %v591
    %v803 = vsel %vm775, %v768, %v592
    %v804 = vsel %vm775, %v769, %v593
    %v805 = vsel %vm775, %v770, %v594
    %v806 = vsel %vm775, %v771, %v595
    %v807 = vsel %vm775, %v772, %v596
    %v808 = vsub.f32 %v195, %v776
    %v809 = vsub.f32 %v198, %v777
    %v810 = vsub.f32 %v203, %v778
    %v811 = vsub.f32 %v206, %v779
    %v812 = vsub.f32 %v211, %v780
    %v813 = vsub.f32 %v214, %v781
    %v814 = vsub.f32 %v219, %v782
    %v815 = vsub.f32 %v222, %v783
    %v816 = vsub.f32 %v227, %v784
    %v817 = vsub.f32 %v230, %v785
    %v818 = vsub.f32 %v235, %v786
    %v819 = vsub.f32 %v238, %v787
    %v820 = vsub.f32 %v243, %v788
    %v821 = vsub.f32 %v246, %v789
    %v822 = vsub.f32 %v251, %v790
    %v823 = vsub.f32 %v254, %v791
    %v824 = vmul.f32 %v808, %v792
    %v825 = vmul.f32 %v809, %v793
    %v826 = vmul.f32 %v810, %v794
    %v827 = vmul.f32 %v811, %v795
    %v828 = vmul.f32 %v812, %v796
    %v829 = vmul.f32 %v813, %v797
    %v830 = vmul.f32 %v814, %v798
    %v831 = vmul.f32 %v815, %v799
    %v832 = vmul.f32 %v816, %v800
    %v833 = vmul.f32 %v817, %v801
    %v834 = vmul.f32 %v818, %v802
    %v835 = vmul.f32 %v819, %v803
    %v836 = vmul.f32 %v820, %v804
    %v837 = vmul.f32 %v821, %v805
    %v838 = vmul.f32 %v822, %v806
    %v839 = vmul.f32 %v823, %v807
    %v841 = vlaneseq
    %v842 = vshrl.u32 %v841, 7
    %v843 = vsub.s32 0, %v842
    %v844 = vrot.slane %v257, %v843
    %v846 = vmul.f32 %v824, %v844
    %v847 = vmul.f32 %v825, %v844
    %v848 = vmul.f32 %v826, %v844
    %v849 = vmul.f32 %v827, %v844
    %v850 = vmul.f32 %v828, %v844
    %v851 = vmul.f32 %v829, %v844
    %v852 = vmul.f32 %v830, %v844
    %v853 = vmul.f32 %v831, %v844
    %v854 = vmul.f32 %v832, %v844
    %v855 = vmul.f32 %v833, %v844
    %v856 = vmul.f32 %v834, %v844
    %v857 = vmul.f32 %v835, %v844
    %v858 = vmul.f32 %v836, %v844
    %v859 = vmul.f32 %v837, %v844
    %v860 = vmul.f32 %v838, %v844
    %v861 = vmul.f32 %v839, %v844
    %v863 = vlaneseq
    %v864 = vshrl.u32 %v863, 7
    %v865 = vsub.s32 0, %v864
    %v866 = vrot.slane %v258, %v865
    %v868 = vadd.f32 %v846, %v866
    %v869 = vadd.f32 %v847, %v866
    %v870 = vadd.f32 %v848, %v866
    %v871 = vadd.f32 %v849, %v866
    %v872 = vadd.f32 %v850, %v866
    %v873 = vadd.f32 %v851, %v866
    %v874 = vadd.f32 %v852, %v866
    %v875 = vadd.f32 %v853, %v866
    %v876 = vadd.f32 %v854, %v866
    %v877 = vadd.f32 %v855, %v866
    %v878 = vadd.f32 %v856, %v866
    %v879 = vadd.f32 %v857, %v866
    %v880 = vadd.f32 %v858, %v866
    %v881 = vadd.f32 %v859, %v866
    %v882 = vadd.f32 %v860, %v866
    %v883 = vadd.f32 %v861, %v866
    %884 = vst.msk [vmem:[#allocation7] sm:$0xff] %vm135, %v868
    %885 = vst.msk [vmem:[#allocation7 + $0x10] sm:$0xff] %vm135, %v869
    %886 = vst.msk [vmem:[#allocation7 + $0x20] sm:$0xff] %vm135, %v870
    %887 = vst.msk [vmem:[#allocation7 + $0x30] sm:$0xff] %vm135, %v871
    %888 = vst.msk [vmem:[#allocation7 + $0x40] sm:$0xff] %vm135, %v872
    %889 = vst.msk [vmem:[#allocation7 + $0x50] sm:$0xff] %vm135, %v873
    %890 = vst.msk [vmem:[#allocation7 + $0x60] sm:$0xff] %vm135, %v874
    %891 = vst.msk [vmem:[#allocation7 + $0x70] sm:$0xff] %vm135, %v875
    %892 = vst.msk [vmem:[#allocation7 + $0x80] sm:$0xff] %vm135, %v876
    %893 = vst.msk [vmem:[#allocation7 + $0x90] sm:$0xff] %vm135, %v877
    %894 = vst.msk [vmem:[#allocation7 + $0xa0] sm:$0xff] %vm135, %v878
    %895 = vst.msk [vmem:[#allocation7 + $0xb0] sm:$0xff] %vm135, %v879
    %896 = vst.msk [vmem:[#allocation7 + $0xc0] sm:$0xff] %vm135, %v880
    %897 = vst.msk [vmem:[#allocation7 + $0xd0] sm:$0xff] %vm135, %v881
    %898 = vst.msk [vmem:[#allocation7 + $0xe0] sm:$0xff] %vm135, %v882
    %899 = vst.msk [vmem:[#allocation7 + $0xf0] sm:$0xff] %vm135, %v883
    %900 = vrot.lane.b32.xlu0 %v195, 96
    %v901 = vpop.permute.xlu0 %900
    %902 = vrot.lane.b32.xlu0 %v198, 96
    %v903 = vpop.permute.xlu0 %902
    %904 = vrot.lane.b32.xlu0 %v203, 96
    %v905 = vpop.permute.xlu0 %904
    %906 = vrot.lane.b32.xlu0 %v206, 96
    %v907 = vpop.permute.xlu0 %906
    %908 = vrot.lane.b32.xlu0 %v211, 96
    %v909 = vpop.permute.xlu0 %908
    %910 = vrot.lane.b32.xlu0 %v214, 96
    %v911 = vpop.permute.xlu0 %910
    %912 = vrot.lane.b32.xlu0 %v219, 96
    %v913 = vpop.permute.xlu0 %912
    %914 = vrot.lane.b32.xlu0 %v222, 96
    %v915 = vpop.permute.xlu0 %914
    %916 = vrot.lane.b32.xlu0 %v227, 96
    %v917 = vpop.permute.xlu0 %916
    %918 = vrot.lane.b32.xlu0 %v230, 96
    %v919 = vpop.permute.xlu0 %918
    %920 = vrot.lane.b32.xlu0 %v235, 96
    %v921 = vpop.permute.xlu0 %920
    %922 = vrot.lane.b32.xlu0 %v238, 96
    %v923 = vpop.permute.xlu0 %922
    %924 = vrot.lane.b32.xlu0 %v243, 96
    %v925 = vpop.permute.xlu0 %924
    %926 = vrot.lane.b32.xlu0 %v246, 96
    %v927 = vpop.permute.xlu0 %926
    %928 = vrot.lane.b32.xlu0 %v251, 96
    %v929 = vpop.permute.xlu0 %928
    %930 = vrot.lane.b32.xlu0 %v254, 96
    %v931 = vpop.permute.xlu0 %930
    %v948 = vsel %vm259, %v901, 0.0
    %949 = vadd.xlane.f32.xlu0 %v948
    %v950 = vpop.xlane.xlu0 %949
    %v951 = vsel %vm259, %v903, 0.0
    %952 = vadd.xlane.f32.xlu0 %v951
    %v953 = vpop.xlane.xlu0 %952
    %v954 = vsel %vm259, %v905, 0.0
    %955 = vadd.xlane.f32.xlu0 %v954
    %v956 = vpop.xlane.xlu0 %955
    %v957 = vsel %vm259, %v907, 0.0
    %958 = vadd.xlane.f32.xlu0 %v957
    %v959 = vpop.xlane.xlu0 %958
    %v960 = vsel %vm259, %v909, 0.0
    %961 = vadd.xlane.f32.xlu0 %v960
    %v962 = vpop.xlane.xlu0 %961
    %v963 = vsel %vm259, %v911, 0.0
    %964 = vadd.xlane.f32.xlu0 %v963
    %v965 = vpop.xlane.xlu0 %964
    %v966 = vsel %vm259, %v913, 0.0
    %967 = vadd.xlane.f32.xlu0 %v966
    %v968 = vpop.xlane.xlu0 %967
    %v969 = vsel %vm259, %v915, 0.0
    %970 = vadd.xlane.f32.xlu0 %v969
    %v971 = vpop.xlane.xlu0 %970
    %v972 = vsel %vm259, %v917, 0.0
    %973 = vadd.xlane.f32.xlu0 %v972
    %v974 = vpop.xlane.xlu0 %973
    %v975 = vsel %vm259, %v919, 0.0
    %976 = vadd.xlane.f32.xlu0 %v975
    %v977 = vpop.xlane.xlu0 %976
    %v978 = vsel %vm259, %v921, 0.0
    %979 = vadd.xlane.f32.xlu0 %v978
    %v980 = vpop.xlane.xlu0 %979
    %v981 = vsel %vm259, %v923, 0.0
    %982 = vadd.xlane.f32.xlu0 %v981
    %v983 = vpop.xlane.xlu0 %982
    %v984 = vsel %vm259, %v925, 0.0
    %985 = vadd.xlane.f32.xlu0 %v984
    %v986 = vpop.xlane.xlu0 %985
    %v987 = vsel %vm259, %v927, 0.0
    %988 = vadd.xlane.f32.xlu0 %v987
    %v989 = vpop.xlane.xlu0 %988
    %v990 = vsel %vm259, %v929, 0.0
    %991 = vadd.xlane.f32.xlu0 %v990
    %v992 = vpop.xlane.xlu0 %991
    %v993 = vsel %vm259, %v931, 0.0
    %994 = vadd.xlane.f32.xlu0 %v993
    %v995 = vpop.xlane.xlu0 %994
    %v996 = vmul.f32 %v950, %v308
    %v997 = vmul.f32 %v953, %v308
    %v998 = vmul.f32 %v956, %v308
    %v999 = vmul.f32 %v959, %v308
    %v1000 = vmul.f32 %v962, %v308
    %v1001 = vmul.f32 %v965, %v308
    %v1002 = vmul.f32 %v968, %v308
    %v1003 = vmul.f32 %v971, %v308
    %v1004 = vmul.f32 %v974, %v308
    %v1005 = vmul.f32 %v977, %v308
    %v1006 = vmul.f32 %v980, %v308
    %v1007 = vmul.f32 %v983, %v308
    %v1008 = vmul.f32 %v986, %v308
    %v1009 = vmul.f32 %v989, %v308
    %v1010 = vmul.f32 %v992, %v308
    %v1011 = vmul.f32 %v995, %v308
    %1012 = vrot.lane.b32.xlu0 %v195, 80
    %v1013 = vpop.permute.xlu0 %1012
    %1014 = vrot.lane.b32.xlu0 %v198, 80
    %v1015 = vpop.permute.xlu0 %1014
    %1016 = vrot.lane.b32.xlu0 %v203, 80
    %v1017 = vpop.permute.xlu0 %1016
    %1018 = vrot.lane.b32.xlu0 %v206, 80
    %v1019 = vpop.permute.xlu0 %1018
    %1020 = vrot.lane.b32.xlu0 %v211, 80
    %v1021 = vpop.permute.xlu0 %1020
    %1022 = vrot.lane.b32.xlu0 %v214, 80
    %v1023 = vpop.permute.xlu0 %1022
    %1024 = vrot.lane.b32.xlu0 %v219, 80
    %v1025 = vpop.permute.xlu0 %1024
    %1026 = vrot.lane.b32.xlu0 %v222, 80
    %v1027 = vpop.permute.xlu0 %1026
    %1028 = vrot.lane.b32.xlu0 %v227, 80
    %v1029 = vpop.permute.xlu0 %1028
    %1030 = vrot.lane.b32.xlu0 %v230, 80
    %v1031 = vpop.permute.xlu0 %1030
    %1032 = vrot.lane.b32.xlu0 %v235, 80
    %v1033 = vpop.permute.xlu0 %1032
    %1034 = vrot.lane.b32.xlu0 %v238, 80
    %v1035 = vpop.permute.xlu0 %1034
    %1036 = vrot.lane.b32.xlu0 %v243, 80
    %v1037 = vpop.permute.xlu0 %1036
    %1038 = vrot.lane.b32.xlu0 %v246, 80
    %v1039 = vpop.permute.xlu0 %1038
    %1040 = vrot.lane.b32.xlu0 %v251, 80
    %v1041 = vpop.permute.xlu0 %1040
    %1042 = vrot.lane.b32.xlu0 %v254, 80
    %v1043 = vpop.permute.xlu0 %1042
    %v1060 = vsel %vm259, %v1013, 0.0
    %1061 = vadd.xlane.f32.xlu0 %v1060
    %v1062 = vpop.xlane.xlu0 %1061
    %v1063 = vsel %vm259, %v1015, 0.0
    %1064 = vadd.xlane.f32.xlu0 %v1063
    %v1065 = vpop.xlane.xlu0 %1064
    %v1066 = vsel %vm259, %v1017, 0.0
    %1067 = vadd.xlane.f32.xlu0 %v1066
    %v1068 = vpop.xlane.xlu0 %1067
    %v1069 = vsel %vm259, %v1019, 0.0
    %1070 = vadd.xlane.f32.xlu0 %v1069
    %v1071 = vpop.xlane.xlu0 %1070
    %v1072 = vsel %vm259, %v1021, 0.0
    %1073 = vadd.xlane.f32.xlu0 %v1072
    %v1074 = vpop.xlane.xlu0 %1073
    %v1075 = vsel %vm259, %v1023, 0.0
    %1076 = vadd.xlane.f32.xlu0 %v1075
    %v1077 = vpop.xlane.xlu0 %1076
    %v1078 = vsel %vm259, %v1025, 0.0
    %1079 = vadd.xlane.f32.xlu0 %v1078
    %v1080 = vpop.xlane.xlu0 %1079
    %v1081 = vsel %vm259, %v1027, 0.0
    %1082 = vadd.xlane.f32.xlu0 %v1081
    %v1083 = vpop.xlane.xlu0 %1082
    %v1084 = vsel %vm259, %v1029, 0.0
    %1085 = vadd.xlane.f32.xlu0 %v1084
    %v1086 = vpop.xlane.xlu0 %1085
    %v1087 = vsel %vm259, %v1031, 0.0
    %1088 = vadd.xlane.f32.xlu0 %v1087
    %v1089 = vpop.xlane.xlu0 %1088
    %v1090 = vsel %vm259, %v1033, 0.0
    %1091 = vadd.xlane.f32.xlu0 %v1090
    %v1092 = vpop.xlane.xlu0 %1091
    %v1093 = vsel %vm259, %v1035, 0.0
    %1094 = vadd.xlane.f32.xlu0 %v1093
    %v1095 = vpop.xlane.xlu0 %1094
    %v1096 = vsel %vm259, %v1037, 0.0
    %1097 = vadd.xlane.f32.xlu0 %v1096
    %v1098 = vpop.xlane.xlu0 %1097
    %v1099 = vsel %vm259, %v1039, 0.0
    %1100 = vadd.xlane.f32.xlu0 %v1099
    %v1101 = vpop.xlane.xlu0 %1100
    %v1102 = vsel %vm259, %v1041, 0.0
    %1103 = vadd.xlane.f32.xlu0 %v1102
    %v1104 = vpop.xlane.xlu0 %1103
    %v1105 = vsel %vm259, %v1043, 0.0
    %1106 = vadd.xlane.f32.xlu0 %v1105
    %v1107 = vpop.xlane.xlu0 %1106
    %v1108 = vmul.f32 %v1062, %v308
    %v1109 = vmul.f32 %v1065, %v308
    %v1110 = vmul.f32 %v1068, %v308
    %v1111 = vmul.f32 %v1071, %v308
    %v1112 = vmul.f32 %v1074, %v308
    %v1113 = vmul.f32 %v1077, %v308
    %v1114 = vmul.f32 %v1080, %v308
    %v1115 = vmul.f32 %v1083, %v308
    %v1116 = vmul.f32 %v1086, %v308
    %v1117 = vmul.f32 %v1089, %v308
    %v1118 = vmul.f32 %v1092, %v308
    %v1119 = vmul.f32 %v1095, %v308
    %v1120 = vmul.f32 %v1098, %v308
    %v1121 = vmul.f32 %v1101, %v308
    %v1122 = vmul.f32 %v1104, %v308
    %v1123 = vmul.f32 %v1107, %v308
    %v1124 = vsub.f32 %v195, %v996
    %v1125 = vsub.f32 %v198, %v997
    %v1126 = vsub.f32 %v203, %v998
    %v1127 = vsub.f32 %v206, %v999
    %v1128 = vsub.f32 %v211, %v1000
    %v1129 = vsub.f32 %v214, %v1001
    %v1130 = vsub.f32 %v219, %v1002
    %v1131 = vsub.f32 %v222, %v1003
    %v1132 = vsub.f32 %v227, %v1004
    %v1133 = vsub.f32 %v230, %v1005
    %v1134 = vsub.f32 %v235, %v1006
    %v1135 = vsub.f32 %v238, %v1007
    %v1136 = vsub.f32 %v243, %v1008
    %v1137 = vsub.f32 %v246, %v1009
    %v1138 = vsub.f32 %v251, %v1010
    %v1139 = vsub.f32 %v254, %v1011
    %v1140 = vsub.f32 %v195, %v1108
    %v1141 = vsub.f32 %v198, %v1109
    %v1142 = vsub.f32 %v203, %v1110
    %v1143 = vsub.f32 %v206, %v1111
    %v1144 = vsub.f32 %v211, %v1112
    %v1145 = vsub.f32 %v214, %v1113
    %v1146 = vsub.f32 %v219, %v1114
    %v1147 = vsub.f32 %v222, %v1115
    %v1148 = vsub.f32 %v227, %v1116
    %v1149 = vsub.f32 %v230, %v1117
    %v1150 = vsub.f32 %v235, %v1118
    %v1151 = vsub.f32 %v238, %v1119
    %v1152 = vsub.f32 %v243, %v1120
    %v1153 = vsub.f32 %v246, %v1121
    %v1154 = vsub.f32 %v251, %v1122
    %v1155 = vsub.f32 %v254, %v1123
    %v1156 = vmul.f32 %v1124, %v1124
    %v1157 = vmul.f32 %v1125, %v1125
    %v1158 = vmul.f32 %v1126, %v1126
    %v1159 = vmul.f32 %v1127, %v1127
    %v1160 = vmul.f32 %v1128, %v1128
    %v1161 = vmul.f32 %v1129, %v1129
    %v1162 = vmul.f32 %v1130, %v1130
    %v1163 = vmul.f32 %v1131, %v1131
    %v1164 = vmul.f32 %v1132, %v1132
    %v1165 = vmul.f32 %v1133, %v1133
    %v1166 = vmul.f32 %v1134, %v1134
    %v1167 = vmul.f32 %v1135, %v1135
    %v1168 = vmul.f32 %v1136, %v1136
    %v1169 = vmul.f32 %v1137, %v1137
    %v1170 = vmul.f32 %v1138, %v1138
    %v1171 = vmul.f32 %v1139, %v1139
    %1188 = vrot.lane.b32.xlu0 %v1156, 96
    %v1189 = vpop.permute.xlu0 %1188
    %1190 = vrot.lane.b32.xlu0 %v1157, 96
    %v1191 = vpop.permute.xlu0 %1190
    %1192 = vrot.lane.b32.xlu0 %v1158, 96
    %v1193 = vpop.permute.xlu0 %1192
    %1194 = vrot.lane.b32.xlu0 %v1159, 96
    %v1195 = vpop.permute.xlu0 %1194
    %1196 = vrot.lane.b32.xlu0 %v1160, 96
    %v1197 = vpop.permute.xlu0 %1196
    %1198 = vrot.lane.b32.xlu0 %v1161, 96
    %v1199 = vpop.permute.xlu0 %1198
    %1200 = vrot.lane.b32.xlu0 %v1162, 96
    %v1201 = vpop.permute.xlu0 %1200
    %1202 = vrot.lane.b32.xlu0 %v1163, 96
    %v1203 = vpop.permute.xlu0 %1202
    %1204 = vrot.lane.b32.xlu0 %v1164, 96
    %v1205 = vpop.permute.xlu0 %1204
    %1206 = vrot.lane.b32.xlu0 %v1165, 96
    %v1207 = vpop.permute.xlu0 %1206
    %1208 = vrot.lane.b32.xlu0 %v1166, 96
    %v1209 = vpop.permute.xlu0 %1208
    %1210 = vrot.lane.b32.xlu0 %v1167, 96
    %v1211 = vpop.permute.xlu0 %1210
    %1212 = vrot.lane.b32.xlu0 %v1168, 96
    %v1213 = vpop.permute.xlu0 %1212
    %1214 = vrot.lane.b32.xlu0 %v1169, 96
    %v1215 = vpop.permute.xlu0 %1214
    %1216 = vrot.lane.b32.xlu0 %v1170, 96
    %v1217 = vpop.permute.xlu0 %1216
    %1218 = vrot.lane.b32.xlu0 %v1171, 96
    %v1219 = vpop.permute.xlu0 %1218
    %v1236 = vsel %vm259, %v1189, 0.0
    %1237 = vadd.xlane.f32.xlu0 %v1236
    %v1238 = vpop.xlane.xlu0 %1237
    %v1239 = vsel %vm259, %v1191, 0.0
    %1240 = vadd.xlane.f32.xlu0 %v1239
    %v1241 = vpop.xlane.xlu0 %1240
    %v1242 = vsel %vm259, %v1193, 0.0
    %1243 = vadd.xlane.f32.xlu0 %v1242
    %v1244 = vpop.xlane.xlu0 %1243
    %v1245 = vsel %vm259, %v1195, 0.0
    %1246 = vadd.xlane.f32.xlu0 %v1245
    %v1247 = vpop.xlane.xlu0 %1246
    %v1248 = vsel %vm259, %v1197, 0.0
    %1249 = vadd.xlane.f32.xlu0 %v1248
    %v1250 = vpop.xlane.xlu0 %1249
    %v1251 = vsel %vm259, %v1199, 0.0
    %1252 = vadd.xlane.f32.xlu0 %v1251
    %v1253 = vpop.xlane.xlu0 %1252
    %v1254 = vsel %vm259, %v1201, 0.0
    %1255 = vadd.xlane.f32.xlu0 %v1254
    %v1256 = vpop.xlane.xlu0 %1255
    %v1257 = vsel %vm259, %v1203, 0.0
    %1258 = vadd.xlane.f32.xlu0 %v1257
    %v1259 = vpop.xlane.xlu0 %1258
    %v1260 = vsel %vm259, %v1205, 0.0
    %1261 = vadd.xlane.f32.xlu0 %v1260
    %v1262 = vpop.xlane.xlu0 %1261
    %v1263 = vsel %vm259, %v1207, 0.0
    %1264 = vadd.xlane.f32.xlu0 %v1263
    %v1265 = vpop.xlane.xlu0 %1264
    %v1266 = vsel %vm259, %v1209, 0.0
    %1267 = vadd.xlane.f32.xlu0 %v1266
    %v1268 = vpop.xlane.xlu0 %1267
    %v1269 = vsel %vm259, %v1211, 0.0
    %1270 = vadd.xlane.f32.xlu0 %v1269
    %v1271 = vpop.xlane.xlu0 %1270
    %v1272 = vsel %vm259, %v1213, 0.0
    %1273 = vadd.xlane.f32.xlu0 %v1272
    %v1274 = vpop.xlane.xlu0 %1273
    %v1275 = vsel %vm259, %v1215, 0.0
    %1276 = vadd.xlane.f32.xlu0 %v1275
    %v1277 = vpop.xlane.xlu0 %1276
    %v1278 = vsel %vm259, %v1217, 0.0
    %1279 = vadd.xlane.f32.xlu0 %v1278
    %v1280 = vpop.xlane.xlu0 %1279
    %v1281 = vsel %vm259, %v1219, 0.0
    %1282 = vadd.xlane.f32.xlu0 %v1281
    %v1283 = vpop.xlane.xlu0 %1282
    %v1284 = vmul.f32 %v1238, %v308
    %v1285 = vmul.f32 %v1241, %v308
    %v1286 = vmul.f32 %v1244, %v308
    %v1287 = vmul.f32 %v1247, %v308
    %v1288 = vmul.f32 %v1250, %v308
    %v1289 = vmul.f32 %v1253, %v308
    %v1290 = vmul.f32 %v1256, %v308
    %v1291 = vmul.f32 %v1259, %v308
    %v1292 = vmul.f32 %v1262, %v308
    %v1293 = vmul.f32 %v1265, %v308
    %v1294 = vmul.f32 %v1268, %v308
    %v1295 = vmul.f32 %v1271, %v308
    %v1296 = vmul.f32 %v1274, %v308
    %v1297 = vmul.f32 %v1277, %v308
    %v1298 = vmul.f32 %v1280, %v308
    %v1299 = vmul.f32 %v1283, %v308
    %v1300 = vadd.f32 %v1284, 1e-05
    %v1301 = vadd.f32 %v1285, 1e-05
    %v1302 = vadd.f32 %v1286, 1e-05
    %v1303 = vadd.f32 %v1287, 1e-05
    %v1304 = vadd.f32 %v1288, 1e-05
    %v1305 = vadd.f32 %v1289, 1e-05
    %v1306 = vadd.f32 %v1290, 1e-05
    %v1307 = vadd.f32 %v1291, 1e-05
    %v1308 = vadd.f32 %v1292, 1e-05
    %v1309 = vadd.f32 %v1293, 1e-05
    %v1310 = vadd.f32 %v1294, 1e-05
    %v1311 = vadd.f32 %v1295, 1e-05
    %v1312 = vadd.f32 %v1296, 1e-05
    %v1313 = vadd.f32 %v1297, 1e-05
    %v1314 = vadd.f32 %v1298, 1e-05
    %v1315 = vadd.f32 %v1299, 1e-05
    %v1316 = vrsqrt.pop %v1300
    %v1317 = vrsqrt.pop %v1301
    %v1318 = vrsqrt.pop %v1302
    %v1319 = vrsqrt.pop %v1303
    %v1320 = vrsqrt.pop %v1304
    %v1321 = vrsqrt.pop %v1305
    %v1322 = vrsqrt.pop %v1306
    %v1323 = vrsqrt.pop %v1307
    %v1324 = vrsqrt.pop %v1308
    %v1325 = vrsqrt.pop %v1309
    %v1326 = vrsqrt.pop %v1310
    %v1327 = vrsqrt.pop %v1311
    %v1328 = vrsqrt.pop %v1312
    %v1329 = vrsqrt.pop %v1313
    %v1330 = vrsqrt.pop %v1314
    %v1331 = vrsqrt.pop %v1315
    %v1332 = vmul.f32 %v1140, %v1140
    %v1333 = vmul.f32 %v1141, %v1141
    %v1334 = vmul.f32 %v1142, %v1142
    %v1335 = vmul.f32 %v1143, %v1143
    %v1336 = vmul.f32 %v1144, %v1144
    %v1337 = vmul.f32 %v1145, %v1145
    %v1338 = vmul.f32 %v1146, %v1146
    %v1339 = vmul.f32 %v1147, %v1147
    %v1340 = vmul.f32 %v1148, %v1148
    %v1341 = vmul.f32 %v1149, %v1149
    %v1342 = vmul.f32 %v1150, %v1150
    %v1343 = vmul.f32 %v1151, %v1151
    %v1344 = vmul.f32 %v1152, %v1152
    %v1345 = vmul.f32 %v1153, %v1153
    %v1346 = vmul.f32 %v1154, %v1154
    %v1347 = vmul.f32 %v1155, %v1155
    %1364 = vrot.lane.b32.xlu0 %v1332, 80
    %v1365 = vpop.permute.xlu0 %1364
    %1366 = vrot.lane.b32.xlu0 %v1333, 80
    %v1367 = vpop.permute.xlu0 %1366
    %1368 = vrot.lane.b32.xlu0 %v1334, 80
    %v1369 = vpop.permute.xlu0 %1368
    %1370 = vrot.lane.b32.xlu0 %v1335, 80
    %v1371 = vpop.permute.xlu0 %1370
    %1372 = vrot.lane.b32.xlu0 %v1336, 80
    %v1373 = vpop.permute.xlu0 %1372
    %1374 = vrot.lane.b32.xlu0 %v1337, 80
    %v1375 = vpop.permute.xlu0 %1374
    %1376 = vrot.lane.b32.xlu0 %v1338, 80
    %v1377 = vpop.permute.xlu0 %1376
    %1378 = vrot.lane.b32.xlu0 %v1339, 80
    %v1379 = vpop.permute.xlu0 %1378
    %1380 = vrot.lane.b32.xlu0 %v1340, 80
    %v1381 = vpop.permute.xlu0 %1380
    %1382 = vrot.lane.b32.xlu0 %v1341, 80
    %v1383 = vpop.permute.xlu0 %1382
    %1384 = vrot.lane.b32.xlu0 %v1342, 80
    %v1385 = vpop.permute.xlu0 %1384
    %1386 = vrot.lane.b32.xlu0 %v1343, 80
    %v1387 = vpop.permute.xlu0 %1386
    %1388 = vrot.lane.b32.xlu0 %v1344, 80
    %v1389 = vpop.permute.xlu0 %1388
    %1390 = vrot.lane.b32.xlu0 %v1345, 80
    %v1391 = vpop.permute.xlu0 %1390
    %1392 = vrot.lane.b32.xlu0 %v1346, 80
    %v1393 = vpop.permute.xlu0 %1392
    %1394 = vrot.lane.b32.xlu0 %v1347, 80
    %v1395 = vpop.permute.xlu0 %1394
    %v1412 = vsel %vm259, %v1365, 0.0
    %1413 = vadd.xlane.f32.xlu0 %v1412
    %v1414 = vpop.xlane.xlu0 %1413
    %v1415 = vsel %vm259, %v1367, 0.0
    %1416 = vadd.xlane.f32.xlu0 %v1415
    %v1417 = vpop.xlane.xlu0 %1416
    %v1418 = vsel %vm259, %v1369, 0.0
    %1419 = vadd.xlane.f32.xlu0 %v1418
    %v1420 = vpop.xlane.xlu0 %1419
    %v1421 = vsel %vm259, %v1371, 0.0
    %1422 = vadd.xlane.f32.xlu0 %v1421
    %v1423 = vpop.xlane.xlu0 %1422
    %v1424 = vsel %vm259, %v1373, 0.0
    %1425 = vadd.xlane.f32.xlu0 %v1424
    %v1426 = vpop.xlane.xlu0 %1425
    %v1427 = vsel %vm259, %v1375, 0.0
    %1428 = vadd.xlane.f32.xlu0 %v1427
    %v1429 = vpop.xlane.xlu0 %1428
    %v1430 = vsel %vm259, %v1377, 0.0
    %1431 = vadd.xlane.f32.xlu0 %v1430
    %v1432 = vpop.xlane.xlu0 %1431
    %v1433 = vsel %vm259, %v1379, 0.0
    %1434 = vadd.xlane.f32.xlu0 %v1433
    %v1435 = vpop.xlane.xlu0 %1434
    %v1436 = vsel %vm259, %v1381, 0.0
    %1437 = vadd.xlane.f32.xlu0 %v1436
    %v1438 = vpop.xlane.xlu0 %1437
    %v1439 = vsel %vm259, %v1383, 0.0
    %1440 = vadd.xlane.f32.xlu0 %v1439
    %v1441 = vpop.xlane.xlu0 %1440
    %v1442 = vsel %vm259, %v1385, 0.0
    %1443 = vadd.xlane.f32.xlu0 %v1442
    %v1444 = vpop.xlane.xlu0 %1443
    %v1445 = vsel %vm259, %v1387, 0.0
    %1446 = vadd.xlane.f32.xlu0 %v1445
    %v1447 = vpop.xlane.xlu0 %1446
    %v1448 = vsel %vm259, %v1389, 0.0
    %1449 = vadd.xlane.f32.xlu0 %v1448
    %v1450 = vpop.xlane.xlu0 %1449
    %v1451 = vsel %vm259, %v1391, 0.0
    %1452 = vadd.xlane.f32.xlu0 %v1451
    %v1453 = vpop.xlane.xlu0 %1452
    %v1454 = vsel %vm259, %v1393, 0.0
    %1455 = vadd.xlane.f32.xlu0 %v1454
    %v1456 = vpop.xlane.xlu0 %1455
    %v1457 = vsel %vm259, %v1395, 0.0
    %1458 = vadd.xlane.f32.xlu0 %v1457
    %v1459 = vpop.xlane.xlu0 %1458
    %v1460 = vmul.f32 %v1414, %v308
    %v1461 = vmul.f32 %v1417, %v308
    %v1462 = vmul.f32 %v1420, %v308
    %v1463 = vmul.f32 %v1423, %v308
    %v1464 = vmul.f32 %v1426, %v308
    %v1465 = vmul.f32 %v1429, %v308
    %v1466 = vmul.f32 %v1432, %v308
    %v1467 = vmul.f32 %v1435, %v308
    %v1468 = vmul.f32 %v1438, %v308
    %v1469 = vmul.f32 %v1441, %v308
    %v1470 = vmul.f32 %v1444, %v308
    %v1471 = vmul.f32 %v1447, %v308
    %v1472 = vmul.f32 %v1450, %v308
    %v1473 = vmul.f32 %v1453, %v308
    %v1474 = vmul.f32 %v1456, %v308
    %v1475 = vmul.f32 %v1459, %v308
    %v1476 = vadd.f32 %v1460, 1e-05
    %v1477 = vadd.f32 %v1461, 1e-05
    %v1478 = vadd.f32 %v1462, 1e-05
    %v1479 = vadd.f32 %v1463, 1e-05
    %v1480 = vadd.f32 %v1464, 1e-05
    %v1481 = vadd.f32 %v1465, 1e-05
    %v1482 = vadd.f32 %v1466, 1e-05
    %v1483 = vadd.f32 %v1467, 1e-05
    %v1484 = vadd.f32 %v1468, 1e-05
    %v1485 = vadd.f32 %v1469, 1e-05
    %v1486 = vadd.f32 %v1470, 1e-05
    %v1487 = vadd.f32 %v1471, 1e-05
    %v1488 = vadd.f32 %v1472, 1e-05
    %v1489 = vadd.f32 %v1473, 1e-05
    %v1490 = vadd.f32 %v1474, 1e-05
    %v1491 = vadd.f32 %v1475, 1e-05
    %v1492 = vrsqrt.pop %v1476
    %v1493 = vrsqrt.pop %v1477
    %v1494 = vrsqrt.pop %v1478
    %v1495 = vrsqrt.pop %v1479
    %v1496 = vrsqrt.pop %v1480
    %v1497 = vrsqrt.pop %v1481
    %v1498 = vrsqrt.pop %v1482
    %v1499 = vrsqrt.pop %v1483
    %v1500 = vrsqrt.pop %v1484
    %v1501 = vrsqrt.pop %v1485
    %v1502 = vrsqrt.pop %v1486
    %v1503 = vrsqrt.pop %v1487
    %v1504 = vrsqrt.pop %v1488
    %v1505 = vrsqrt.pop %v1489
    %v1506 = vrsqrt.pop %v1490
    %v1507 = vrsqrt.pop %v1491
    %v1508 = vsel %vm775, %v1108, %v996
    %v1509 = vsel %vm775, %v1109, %v997
    %v1510 = vsel %vm775, %v1110, %v998
    %v1511 = vsel %vm775, %v1111, %v999
    %v1512 = vsel %vm775, %v1112, %v1000
    %v1513 = vsel %vm775, %v1113, %v1001
    %v1514 = vsel %vm775, %v1114, %v1002
    %v1515 = vsel %vm775, %v1115, %v1003
    %v1516 = vsel %vm775, %v1116, %v1004
    %v1517 = vsel %vm775, %v1117, %v1005
    %v1518 = vsel %vm775, %v1118, %v1006
    %v1519 = vsel %vm775, %v1119, %v1007
    %v1520 = vsel %vm775, %v1120, %v1008
    %v1521 = vsel %vm775, %v1121, %v1009
    %v1522 = vsel %vm775, %v1122, %v1010
    %v1523 = vsel %vm775, %v1123, %v1011
    %v1524 = vsel %vm775, %v1492, %v1316
    %v1525 = vsel %vm775, %v1493, %v1317
    %v1526 = vsel %vm775, %v1494, %v1318
    %v1527 = vsel %vm775, %v1495, %v1319
    %v1528 = vsel %vm775, %v1496, %v1320
    %v1529 = vsel %vm775, %v1497, %v1321
    %v1530 = vsel %vm775, %v1498, %v1322
    %v1531 = vsel %vm775, %v1499, %v1323
    %v1532 = vsel %vm775, %v1500, %v1324
    %v1533 = vsel %vm775, %v1501, %v1325
    %v1534 = vsel %vm775, %v1502, %v1326
    %v1535 = vsel %vm775, %v1503, %v1327
    %v1536 = vsel %vm775, %v1504, %v1328
    %v1537 = vsel %vm775, %v1505, %v1329
    %v1538 = vsel %vm775, %v1506, %v1330
    %v1539 = vsel %vm775, %v1507, %v1331
    %1556 = vrot.lane.b32.xlu0 %v1508, 32
    %v1557 = vpop.permute.xlu0 %1556
    %1558 = vrot.lane.b32.xlu0 %v1509, 32
    %v1559 = vpop.permute.xlu0 %1558
    %1560 = vrot.lane.b32.xlu0 %v1510, 32
    %v1561 = vpop.permute.xlu0 %1560
    %1562 = vrot.lane.b32.xlu0 %v1511, 32
    %v1563 = vpop.permute.xlu0 %1562
    %1564 = vrot.lane.b32.xlu0 %v1512, 32
    %v1565 = vpop.permute.xlu0 %1564
    %1566 = vrot.lane.b32.xlu0 %v1513, 32
    %v1567 = vpop.permute.xlu0 %1566
    %1568 = vrot.lane.b32.xlu0 %v1514, 32
    %v1569 = vpop.permute.xlu0 %1568
    %1570 = vrot.lane.b32.xlu0 %v1515, 32
    %v1571 = vpop.permute.xlu0 %1570
    %1572 = vrot.lane.b32.xlu0 %v1516, 32
    %v1573 = vpop.permute.xlu0 %1572
    %1574 = vrot.lane.b32.xlu0 %v1517, 32
    %v1575 = vpop.permute.xlu0 %1574
    %1576 = vrot.lane.b32.xlu0 %v1518, 32
    %v1577 = vpop.permute.xlu0 %1576
    %1578 = vrot.lane.b32.xlu0 %v1519, 32
    %v1579 = vpop.permute.xlu0 %1578
    %1580 = vrot.lane.b32.xlu0 %v1520, 32
    %v1581 = vpop.permute.xlu0 %1580
    %1582 = vrot.lane.b32.xlu0 %v1521, 32
    %v1583 = vpop.permute.xlu0 %1582
    %1584 = vrot.lane.b32.xlu0 %v1522, 32
    %v1585 = vpop.permute.xlu0 %1584
    %1586 = vrot.lane.b32.xlu0 %v1523, 32
    %v1587 = vpop.permute.xlu0 %1586
    %v1604 = vsub.f32 %v195, %v1557
    %v1605 = vsub.f32 %v198, %v1559
    %v1606 = vsub.f32 %v203, %v1561
    %v1607 = vsub.f32 %v206, %v1563
    %v1608 = vsub.f32 %v211, %v1565
    %v1609 = vsub.f32 %v214, %v1567
    %v1610 = vsub.f32 %v219, %v1569
    %v1611 = vsub.f32 %v222, %v1571
    %v1612 = vsub.f32 %v227, %v1573
    %v1613 = vsub.f32 %v230, %v1575
    %v1614 = vsub.f32 %v235, %v1577
    %v1615 = vsub.f32 %v238, %v1579
    %v1616 = vsub.f32 %v243, %v1581
    %v1617 = vsub.f32 %v246, %v1583
    %v1618 = vsub.f32 %v251, %v1585
    %v1619 = vsub.f32 %v254, %v1587
    %1636 = vrot.lane.b32.xlu0 %v1524, 32
    %v1637 = vpop.permute.xlu0 %1636
    %1638 = vrot.lane.b32.xlu0 %v1525, 32
    %v1639 = vpop.permute.xlu0 %1638
    %1640 = vrot.lane.b32.xlu0 %v1526, 32
    %v1641 = vpop.permute.xlu0 %1640
    %1642 = vrot.lane.b32.xlu0 %v1527, 32
    %v1643 = vpop.permute.xlu0 %1642
    %1644 = vrot.lane.b32.xlu0 %v1528, 32
    %v1645 = vpop.permute.xlu0 %1644
    %1646 = vrot.lane.b32.xlu0 %v1529, 32
    %v1647 = vpop.permute.xlu0 %1646
    %1648 = vrot.lane.b32.xlu0 %v1530, 32
    %v1649 = vpop.permute.xlu0 %1648
    %1650 = vrot.lane.b32.xlu0 %v1531, 32
    %v1651 = vpop.permute.xlu0 %1650
    %1652 = vrot.lane.b32.xlu0 %v1532, 32
    %v1653 = vpop.permute.xlu0 %1652
    %1654 = vrot.lane.b32.xlu0 %v1533, 32
    %v1655 = vpop.permute.xlu0 %1654
    %1656 = vrot.lane.b32.xlu0 %v1534, 32
    %v1657 = vpop.permute.xlu0 %1656
    %1658 = vrot.lane.b32.xlu0 %v1535, 32
    %v1659 = vpop.permute.xlu0 %1658
    %1660 = vrot.lane.b32.xlu0 %v1536, 32
    %v1661 = vpop.permute.xlu0 %1660
    %1662 = vrot.lane.b32.xlu0 %v1537, 32
    %v1663 = vpop.permute.xlu0 %1662
    %1664 = vrot.lane.b32.xlu0 %v1538, 32
    %v1665 = vpop.permute.xlu0 %1664
    %1666 = vrot.lane.b32.xlu0 %v1539, 32
    %v1667 = vpop.permute.xlu0 %1666
    %v1684 = vmul.f32 %v1604, %v1637
    %v1685 = vmul.f32 %v1605, %v1639
    %v1686 = vmul.f32 %v1606, %v1641
    %v1687 = vmul.f32 %v1607, %v1643
    %v1688 = vmul.f32 %v1608, %v1645
    %v1689 = vmul.f32 %v1609, %v1647
    %v1690 = vmul.f32 %v1610, %v1649
    %v1691 = vmul.f32 %v1611, %v1651
    %v1692 = vmul.f32 %v1612, %v1653
    %v1693 = vmul.f32 %v1613, %v1655
    %v1694 = vmul.f32 %v1614, %v1657
    %v1695 = vmul.f32 %v1615, %v1659
    %v1696 = vmul.f32 %v1616, %v1661
    %v1697 = vmul.f32 %v1617, %v1663
    %v1698 = vmul.f32 %v1618, %v1665
    %v1699 = vmul.f32 %v1619, %v1667
    %1700 = vrot.lane.b32.xlu0 %v844, 32
    %v1701 = vpop.permute.xlu0 %1700
    %v1703 = vmul.f32 %v1684, %v1701
    %v1704 = vmul.f32 %v1685, %v1701
    %v1705 = vmul.f32 %v1686, %v1701
    %v1706 = vmul.f32 %v1687, %v1701
    %v1707 = vmul.f32 %v1688, %v1701
    %v1708 = vmul.f32 %v1689, %v1701
    %v1709 = vmul.f32 %v1690, %v1701
    %v1710 = vmul.f32 %v1691, %v1701
    %v1711 = vmul.f32 %v1692, %v1701
    %v1712 = vmul.f32 %v1693, %v1701
    %v1713 = vmul.f32 %v1694, %v1701
    %v1714 = vmul.f32 %v1695, %v1701
    %v1715 = vmul.f32 %v1696, %v1701
    %v1716 = vmul.f32 %v1697, %v1701
    %v1717 = vmul.f32 %v1698, %v1701
    %v1718 = vmul.f32 %v1699, %v1701
    %1719 = vrot.lane.b32.xlu0 %v866, 32
    %v1720 = vpop.permute.xlu0 %1719
    %v1722 = vadd.f32 %v1703, %v1720
    %v1723 = vadd.f32 %v1704, %v1720
    %v1724 = vadd.f32 %v1705, %v1720
    %v1725 = vadd.f32 %v1706, %v1720
    %v1726 = vadd.f32 %v1707, %v1720
    %v1727 = vadd.f32 %v1708, %v1720
    %v1728 = vadd.f32 %v1709, %v1720
    %v1729 = vadd.f32 %v1710, %v1720
    %v1730 = vadd.f32 %v1711, %v1720
    %v1731 = vadd.f32 %v1712, %v1720
    %v1732 = vadd.f32 %v1713, %v1720
    %v1733 = vadd.f32 %v1714, %v1720
    %v1734 = vadd.f32 %v1715, %v1720
    %v1735 = vadd.f32 %v1716, %v1720
    %v1736 = vadd.f32 %v1717, %v1720
    %v1737 = vadd.f32 %v1718, %v1720
    %1754 = vrot.lane.b32.xlu0 %v1722, 96
    %v1755 = vpop.permute.xlu0 %1754
    %1756 = vrot.lane.b32.xlu0 %v1723, 96
    %v1757 = vpop.permute.xlu0 %1756
    %1758 = vrot.lane.b32.xlu0 %v1724, 96
    %v1759 = vpop.permute.xlu0 %1758
    %1760 = vrot.lane.b32.xlu0 %v1725, 96
    %v1761 = vpop.permute.xlu0 %1760
    %1762 = vrot.lane.b32.xlu0 %v1726, 96
    %v1763 = vpop.permute.xlu0 %1762
    %1764 = vrot.lane.b32.xlu0 %v1727, 96
    %v1765 = vpop.permute.xlu0 %1764
    %1766 = vrot.lane.b32.xlu0 %v1728, 96
    %v1767 = vpop.permute.xlu0 %1766
    %1768 = vrot.lane.b32.xlu0 %v1729, 96
    %v1769 = vpop.permute.xlu0 %1768
    %1770 = vrot.lane.b32.xlu0 %v1730, 96
    %v1771 = vpop.permute.xlu0 %1770
    %1772 = vrot.lane.b32.xlu0 %v1731, 96
    %v1773 = vpop.permute.xlu0 %1772
    %1774 = vrot.lane.b32.xlu0 %v1732, 96
    %v1775 = vpop.permute.xlu0 %1774
    %1776 = vrot.lane.b32.xlu0 %v1733, 96
    %v1777 = vpop.permute.xlu0 %1776
    %1778 = vrot.lane.b32.xlu0 %v1734, 96
    %v1779 = vpop.permute.xlu0 %1778
    %1780 = vrot.lane.b32.xlu0 %v1735, 96
    %v1781 = vpop.permute.xlu0 %1780
    %1782 = vrot.lane.b32.xlu0 %v1736, 96
    %v1783 = vpop.permute.xlu0 %1782
    %1784 = vrot.lane.b32.xlu0 %v1737, 96
    %v1785 = vpop.permute.xlu0 %1784
    %s1802 = scalar_lea.vmem [#allocation7], 8
    %1803 = vst.msk [vmem:[%s1802] sm:$0xff] %vm135, %v1755
    %1804 = vst.msk [vmem:[%s1802 + $0x10] sm:$0xff] %vm135, %v1757
    %1805 = vst.msk [vmem:[%s1802 + $0x20] sm:$0xff] %vm135, %v1759
    %1806 = vst.msk [vmem:[%s1802 + $0x30] sm:$0xff] %vm135, %v1761
    %1807 = vst.msk [vmem:[%s1802 + $0x40] sm:$0xff] %vm135, %v1763
    %1808 = vst.msk [vmem:[%s1802 + $0x50] sm:$0xff] %vm135, %v1765
    %1809 = vst.msk [vmem:[%s1802 + $0x60] sm:$0xff] %vm135, %v1767
    %1810 = vst.msk [vmem:[%s1802 + $0x70] sm:$0xff] %vm135, %v1769
    %1811 = vst.msk [vmem:[%s1802 + $0x80] sm:$0xff] %vm135, %v1771
    %1812 = vst.msk [vmem:[%s1802 + $0x90] sm:$0xff] %vm135, %v1773
    %1813 = vst.msk [vmem:[%s1802 + $0xa0] sm:$0xff] %vm135, %v1775
    %1814 = vst.msk [vmem:[%s1802 + $0xb0] sm:$0xff] %vm135, %v1777
    %1815 = vst.msk [vmem:[%s1802 + $0xc0] sm:$0xff] %vm135, %v1779
    %1816 = vst.msk [vmem:[%s1802 + $0xd0] sm:$0xff] %vm135, %v1781
    %1817 = vst.msk [vmem:[%s1802 + $0xe0] sm:$0xff] %vm135, %v1783
    %1818 = vst.msk [vmem:[%s1802 + $0xf0] sm:$0xff] %vm135, %v1785
    // Predicated region
    $region26: #{tpu_custom_call.1} parent=1 // pred_check
      _
    $region27: #{tpu_custom_call.1} parent=1 // pred_check_branch
      %1820 = sbr.rel (0) target = $region29
    $region28: #{tpu_custom_call.1} parent=1 // pred_region
      %s1822 = ssub.s32 4096, 4096
      %1823 = vsyncadd [#allocation4], %s1822
      %s1824 = sshll.u32 [#allocation7], 4
      %s1825 = int_to_ptr.vmem [resolvable:$true] %s1824
      %1830 = dma.vmem_to_hbm [thread:$0]  %s1825, 4096, %s4, [#allocation4], 128, 128, 8
    $region29: #{tpu_custom_call.1} parent=1 // pred_fallthru
      _
    // Predicated region
    $region30: #{tpu_custom_call.1} parent=1 // pred_check
      _
    $region31: #{tpu_custom_call.1} parent=1 // pred_check_branch
      %1832 = sbr.rel (0) target = $region33
    $region32: #{tpu_custom_call.1} parent=1 // pred_region
      %1833 = dma.done [#allocation4], 4096
    $region33: #{tpu_custom_call.1} parent=1 // pred_fallthru
      _
    %1834 = vsyncpa [#allocation3], 1
    %1835 = vsyncpa [#allocation6], 1
    %1836 = vsyncpa [#allocation4], 1

</llo_original>
